<compile_context>
chip_gen: v7x
topology: tpu7x:2x2x1
jax: 0.10.0
libtpu: 0.0.40
codegen_flags: <defaults>
</compile_context>

<pallas_src>
import jax
import jax.numpy as jnp
from jax import lax
from jax.experimental import pallas as pl
from jax.experimental.pallas import tpu as pltpu


def ranktrinet_kernel(x_ref, wi3_ref, wh3_ref, wfc_ref, bias_ref, out_ref):
    """Fused GRU recurrence + ReLU + Linear + L2-normalize in one kernel.

    x_ref:    (T*BP, F)     time-major, batch-padded, lane-dense input slab
    wi3_ref:  (F, 3*HP)     input->hidden weights, gates [r|z|n], lane-padded
    wh3_ref:  (HP, 3*HP)    hidden->hidden weights, gates [r|z|n], lane-padded
    wfc_ref:  (HP, EP)      final linear weight (transposed), zero-padded
    bias_ref: (8, 3*HP)     row0 = [b_r|b_z|b_in] (r/z fused b_ih+b_hh),
                            row1[:HP] = b_hn, row2[:EP] = b_fc, rest zero
    out_ref:  (BP, EP)      L2-normalized embedding (padded lanes are 0)
    """
    BP, EP = out_ref.shape
    HP = wh3_ref.shape[0]
    T = x_ref.shape[0] // BP

    # --- Hoisted, gate-fused input projection: one MXU push for all steps. ---
    gi_all = jnp.dot(x_ref[...], wi3_ref[...],
                     preferred_element_type=jnp.float32) + bias_ref[0:1, :]

    # Load recurrence weights once; hoist the b_hn broadcast out of the loop.
    w_h3 = wh3_ref[...]
    b_hn = jnp.broadcast_to(bias_ref[1:2, 0:HP], (BP, HP))

    # --- Serial GRU recurrence: one fused matmul per step, h in registers. ---
    h = jnp.zeros((BP, HP), jnp.float32)
    for t in range(T):                      # static unrolled loop (small T)
        lo = t * BP                         # BP == 8 -> sublane-aligned slice
        gi = gi_all[lo:lo + BP, :]          # (BP, 3*HP)
        gh = jnp.dot(h, w_h3, preferred_element_type=jnp.float32)
        r = jax.nn.sigmoid(gi[:, 0:HP] + gh[:, 0:HP])
        z = jax.nn.sigmoid(gi[:, HP:2 * HP] + gh[:, HP:2 * HP])
        n = jnp.tanh(gi[:, 2 * HP:3 * HP] + r * (gh[:, 2 * HP:3 * HP] + b_hn))
        h = (1.0 - z) * n + z * h

    # --- Head: ReLU -> Linear -> row-wise L2 normalize (eps = 1e-12). ---
    h = jnp.maximum(h, 0.0)
    emb = jnp.dot(h, wfc_ref[...],
                  preferred_element_type=jnp.float32) + bias_ref[2:3, 0:EP]
    norm_sq = jnp.sum(emb * emb, axis=1, keepdims=True)
    # x / max(||x||, 1e-12)  ==  x * rsqrt(max(||x||^2, 1e-24))  (exact rsqrt)
    out_ref[...] = emb * lax.rsqrt(jnp.maximum(norm_sq, 1e-24))


def rank_tri_net_forward(x, act_dim, params):
    """x: (B, T, F, A) float32; act_dim: python int. Returns (B, E) embedding."""
    B, T, F, A = x.shape
    H = params["whh_r"].shape[0]
    E = params["wfc"].shape[1]
    HP = 128                       # per-gate lane-padded width
    EP = 128                       # lane-padded embedding width
    BP = max(8, ((B + 7) // 8) * 8)  # sublane-aligned batch

    # Glue (plain JAX): slice the action column, squeeze, go time-major,
    # zero-pad batch to BP and flatten to a lane-dense 2D slab (T*BP, F).
    x_rank = x[:, :, :, act_dim].astype(jnp.float32)          # (B, T, F)
    x_tm = jnp.transpose(x_rank, (1, 0, 2))                   # (T, B, F)
    x_tm = jnp.pad(x_tm, ((0, 0), (0, BP - B), (0, 0)))       # (T, BP, F)
    x2d = x_tm.reshape(T * BP, F)

    # Gate-fused, zero lane-padded weight slabs.
    pad_cols = lambda w: jnp.pad(w, ((0, 0), (0, HP - H)))
    pad_both = lambda w: jnp.pad(w, ((0, HP - H), (0, HP - H)))
    wi3 = jnp.concatenate([pad_cols(params["wih_r"]),
                           pad_cols(params["wih_z"]),
                           pad_cols(params["wih_n"])], axis=1)   # (F, 3*HP)
    wh3 = jnp.concatenate([pad_both(params["whh_r"]),
                           pad_both(params["whh_z"]),
                           pad_both(params["whh_n"])], axis=1)   # (HP, 3*HP)
    wfc = jnp.pad(params["wfc"], ((0, HP - H), (0, EP - E)))     # (HP, EP)

    # Single packed bias slab (8, 3*HP).  PyTorch GRU adds b_ih + b_hh for the
    # r and z gates; fuse them here.  b_hn stays separate (multiplied by r).
    pad_b = lambda b: jnp.pad(b, ((0, 0), (0, HP - H)))
    row0 = jnp.concatenate([pad_b(params["bih_r"] + params["bhh_r"]),
                            pad_b(params["bih_z"] + params["bhh_z"]),
                            pad_b(params["bih_n"])], axis=1)          # (1, 3*HP)
    row1 = jnp.pad(pad_b(params["bhh_n"]), ((0, 0), (0, 2 * HP)))     # (1, 3*HP)
    row2 = jnp.pad(params["bfc"], ((0, 0), (0, 3 * HP - E)))          # (1, 3*HP)
    biases = jnp.concatenate(
        [row0, row1, row2, jnp.zeros((5, 3 * HP), jnp.float32)], axis=0)  # (8, 3*HP)

    vmem = pl.BlockSpec(memory_space=pltpu.MemorySpace.VMEM)
    # Single program, everything resident in VMEM (~300 KiB total).
    out = pl.pallas_call(
        ranktrinet_kernel,
        out_shape=jax.ShapeDtypeStruct((BP, EP), jnp.float32),
        in_specs=[vmem] * 5,
        out_specs=vmem,
        compiler_params=pltpu.CompilerParams(
            vmem_limit_bytes=32 * 1024 * 1024),
    )(x2d, wi3, wh3, wfc, biases)
    return out[:B, :E]


def rank_tri_net_reference(x, act_dim, params):
    """Pure-JAX reference of the same forward pass (for correctness check)."""
    x_rank = x[:, :, :, act_dim].astype(jnp.float32)               # (B, T, F)
    B, T, F = x_rank.shape
    H = params["whh_r"].shape[0]

    def step(h, x_t):
        r = jax.nn.sigmoid(x_t @ params["wih_r"] + params["bih_r"]
                           + h @ params["whh_r"] + params["bhh_r"])
        z = jax.nn.sigmoid(x_t @ params["wih_z"] + params["bih_z"]
                           + h @ params["whh_z"] + params["bhh_z"])
        n = jnp.tanh(x_t @ params["wih_n"] + params["bih_n"]
                     + r * (h @ params["whh_n"] + params["bhh_n"]))
        h_new = (1.0 - z) * n + z * h
        return h_new, None

    h0 = jnp.zeros((B, H), jnp.float32)
    h_last, _ = lax.scan(step, h0, jnp.transpose(x_rank, (1, 0, 2)))
    emb = jnp.maximum(h_last, 0.0) @ params["wfc"] + params["bfc"]
    norm = jnp.sqrt(jnp.sum(emb * emb, axis=1, keepdims=True))
    return emb / jnp.maximum(norm, 1e-12)


def init_params(key, F, H, E):
    """Deterministic PyTorch-style uniform(-1/sqrt(H), 1/sqrt(H)) init,
    stored per-gate (equivalent to slicing/transposing the fused GRU weights)."""
    ks = jax.random.split(key, 14)
    bound = 1.0 / (H ** 0.5)
    u = lambda k, shape: jax.random.uniform(
        k, shape, minval=-bound, maxval=bound, dtype=jnp.float32)
    return {
        "wih_r": u(ks[0], (F, H)), "wih_z": u(ks[1], (F, H)), "wih_n": u(ks[2], (F, H)),
        "whh_r": u(ks[3], (H, H)), "whh_z": u(ks[4], (H, H)), "whh_n": u(ks[5], (H, H)),
        "bih_r": u(ks[6], (1, H)), "bih_z": u(ks[7], (1, H)), "bih_n": u(ks[8], (1, H)),
        "bhh_r": u(ks[9], (1, H)), "bhh_z": u(ks[10], (1, H)), "bhh_n": u(ks[11], (1, H)),
        "wfc": u(ks[12], (H, E)),   # transposed nn.Linear weight (E, H)
        "bfc": u(ks[13], (1, E)),
    }


if __name__ == "__main__":
    key = jax.random.PRNGKey(0)
    k_x, k_p = jax.random.split(key)

    B, T, F, A = 2, 8, 4, 6      # batch, seq, features, actions
    H, E = 32, 16                # GRU hidden, embedding dim
    act_dim = 2

    x = jax.random.normal(k_x, (B, T, F, A), dtype=jnp.float32)
    params = init_params(k_p, F, H, E)

    emb = rank_tri_net_forward(x, act_dim, params)
    emb = jax.block_until_ready(emb)

    assert emb.shape == (B, E)
    # Rows are L2-normalized.
    assert bool(jnp.all(jnp.abs(jnp.sum(emb * emb, axis=1) - 1.0) < 1e-4))
    # Matches the pure-JAX reference forward pass.
    ref = rank_tri_net_reference(x, act_dim, params)
    assert bool(jnp.all(jnp.abs(emb - ref) < 1e-5))
    print("KERNEL_OK")
</pallas_src>

<mosaic_0001>
module attributes {stable_mosaic.version = 11 : i64} {
  func.func @ranktrinet_kernel(%arg0: memref<64x4xf32, #tpu.memory_space<vmem>>, %arg1: memref<4x384xf32, #tpu.memory_space<vmem>>, %arg2: memref<128x384xf32, #tpu.memory_space<vmem>>, %arg3: memref<128x128xf32, #tpu.memory_space<vmem>>, %arg4: memref<8x384xf32, #tpu.memory_space<vmem>>, %arg5: memref<8x128xf32, #tpu.memory_space<vmem>>) attributes {dimension_semantics = [], scalar_prefetch = 0 : i64, scratch_operands = 0 : i64, tpu.core_type = #tpu.core_type<tc>} {
    %c0 = arith.constant 0 : index
    %c0_0 = arith.constant 0 : index
    %0 = vector.load %arg0[%c0, %c0_0] : memref<64x4xf32, #tpu.memory_space<vmem>>, vector<64x4xf32>
    %c0_1 = arith.constant 0 : index
    %c0_2 = arith.constant 0 : index
    %1 = vector.load %arg1[%c0_1, %c0_2] : memref<4x384xf32, #tpu.memory_space<vmem>>, vector<4x384xf32>
    %cst = arith.constant dense<0.000000e+00> : vector<64x384xf32>
    %2 = tpu.matmul %0, %1, %cst {dimension_numbers = #tpu.dot_dimension_numbers<[1], [0], [0], [1], [0, 0, 1, 1], [], []>} : vector<64x4xf32>, vector<4x384xf32>, vector<64x384xf32> -> vector<64x384xf32>
    %c0_3 = arith.constant 0 : index
    %c0_4 = arith.constant 0 : index
    %3 = vector.load %arg4[%c0_3, %c0_4] : memref<8x384xf32, #tpu.memory_space<vmem>>, vector<1x384xf32>
    %4 = vector.broadcast %3 : vector<1x384xf32> to vector<64x384xf32>
    %5 = arith.addf %2, %4 : vector<64x384xf32>
    %c0_5 = arith.constant 0 : index
    %c0_6 = arith.constant 0 : index
    %6 = vector.load %arg2[%c0_5, %c0_6] : memref<128x384xf32, #tpu.memory_space<vmem>>, vector<128x384xf32>
    %c1 = arith.constant 1 : index
    %c0_7 = arith.constant 0 : index
    %7 = vector.load %arg4[%c1, %c0_7] : memref<8x384xf32, #tpu.memory_space<vmem>>, vector<1x128xf32>
    %8 = vector.shape_cast %7 : vector<1x128xf32> to vector<1x128xf32>
    %9 = vector.broadcast %8 : vector<1x128xf32> to vector<8x128xf32>
    %cst_8 = arith.constant 0.000000e+00 : f32
    %10 = vector.broadcast %cst_8 : f32 to vector<8x128xf32>
    %11 = vector.extract_strided_slice %5 {offsets = [0, 0], sizes = [8, 384], strides = [1, 1]} : vector<64x384xf32> to vector<8x384xf32>
    %cst_9 = arith.constant dense<0.000000e+00> : vector<8x384xf32>
    %12 = tpu.matmul %10, %6, %cst_9 {dimension_numbers = #tpu.dot_dimension_numbers<[1], [0], [0], [1], [0, 0, 1, 1], [], []>} : vector<8x128xf32>, vector<128x384xf32>, vector<8x384xf32> -> vector<8x384xf32>
    %13 = vector.extract_strided_slice %11 {offsets = [0, 0], sizes = [8, 128], strides = [1, 1]} : vector<8x384xf32> to vector<8x128xf32>
    %14 = vector.extract_strided_slice %12 {offsets = [0, 0], sizes = [8, 128], strides = [1, 1]} : vector<8x384xf32> to vector<8x128xf32>
    %15 = arith.addf %13, %14 : vector<8x128xf32>
    %16 = arith.negf %15 : vector<8x128xf32>
    %17 = math.exp %16 : vector<8x128xf32>
    %cst_10 = arith.constant 1.000000e+00 : f32
    %18 = vector.broadcast %cst_10 : f32 to vector<8x128xf32>
    %19 = arith.addf %18, %17 : vector<8x128xf32>
    %20 = arith.divf %18, %19 : vector<8x128xf32>
    %21 = vector.extract_strided_slice %11 {offsets = [0, 128], sizes = [8, 128], strides = [1, 1]} : vector<8x384xf32> to vector<8x128xf32>
    %22 = vector.extract_strided_slice %12 {offsets = [0, 128], sizes = [8, 128], strides = [1, 1]} : vector<8x384xf32> to vector<8x128xf32>
    %23 = arith.addf %21, %22 : vector<8x128xf32>
    %24 = arith.negf %23 : vector<8x128xf32>
    %25 = math.exp %24 : vector<8x128xf32>
    %cst_11 = arith.constant 1.000000e+00 : f32
    %26 = vector.broadcast %cst_11 : f32 to vector<8x128xf32>
    %27 = arith.addf %26, %25 : vector<8x128xf32>
    %28 = arith.divf %26, %27 : vector<8x128xf32>
    %29 = vector.extract_strided_slice %11 {offsets = [0, 256], sizes = [8, 128], strides = [1, 1]} : vector<8x384xf32> to vector<8x128xf32>
    %30 = vector.extract_strided_slice %12 {offsets = [0, 256], sizes = [8, 128], strides = [1, 1]} : vector<8x384xf32> to vector<8x128xf32>
    %31 = arith.addf %30, %9 : vector<8x128xf32>
    %32 = arith.mulf %20, %31 : vector<8x128xf32>
    %33 = arith.addf %29, %32 : vector<8x128xf32>
    %34 = math.tanh %33 : vector<8x128xf32>
    %cst_12 = arith.constant 1.000000e+00 : f32
    %35 = vector.broadcast %cst_12 : f32 to vector<8x128xf32>
    %36 = arith.subf %35, %28 : vector<8x128xf32>
    %37 = arith.mulf %36, %34 : vector<8x128xf32>
    %38 = arith.mulf %28, %10 : vector<8x128xf32>
    %39 = arith.addf %37, %38 : vector<8x128xf32>
    %40 = vector.extract_strided_slice %5 {offsets = [8, 0], sizes = [8, 384], strides = [1, 1]} : vector<64x384xf32> to vector<8x384xf32>
    %cst_13 = arith.constant dense<0.000000e+00> : vector<8x384xf32>
    %41 = tpu.matmul %39, %6, %cst_13 {dimension_numbers = #tpu.dot_dimension_numbers<[1], [0], [0], [1], [0, 0, 1, 1], [], []>} : vector<8x128xf32>, vector<128x384xf32>, vector<8x384xf32> -> vector<8x384xf32>
    %42 = vector.extract_strided_slice %40 {offsets = [0, 0], sizes = [8, 128], strides = [1, 1]} : vector<8x384xf32> to vector<8x128xf32>
    %43 = vector.extract_strided_slice %41 {offsets = [0, 0], sizes = [8, 128], strides = [1, 1]} : vector<8x384xf32> to vector<8x128xf32>
    %44 = arith.addf %42, %43 : vector<8x128xf32>
    %45 = arith.negf %44 : vector<8x128xf32>
    %46 = math.exp %45 : vector<8x128xf32>
    %cst_14 = arith.constant 1.000000e+00 : f32
    %47 = vector.broadcast %cst_14 : f32 to vector<8x128xf32>
    %48 = arith.addf %47, %46 : vector<8x128xf32>
    %49 = arith.divf %47, %48 : vector<8x128xf32>
    %50 = vector.extract_strided_slice %40 {offsets = [0, 128], sizes = [8, 128], strides = [1, 1]} : vector<8x384xf32> to vector<8x128xf32>
    %51 = vector.extract_strided_slice %41 {offsets = [0, 128], sizes = [8, 128], strides = [1, 1]} : vector<8x384xf32> to vector<8x128xf32>
    %52 = arith.addf %50, %51 : vector<8x128xf32>
    %53 = arith.negf %52 : vector<8x128xf32>
    %54 = math.exp %53 : vector<8x128xf32>
    %cst_15 = arith.constant 1.000000e+00 : f32
    %55 = vector.broadcast %cst_15 : f32 to vector<8x128xf32>
    %56 = arith.addf %55, %54 : vector<8x128xf32>
    %57 = arith.divf %55, %56 : vector<8x128xf32>
    %58 = vector.extract_strided_slice %40 {offsets = [0, 256], sizes = [8, 128], strides = [1, 1]} : vector<8x384xf32> to vector<8x128xf32>
    %59 = vector.extract_strided_slice %41 {offsets = [0, 256], sizes = [8, 128], strides = [1, 1]} : vector<8x384xf32> to vector<8x128xf32>
    %60 = arith.addf %59, %9 : vector<8x128xf32>
    %61 = arith.mulf %49, %60 : vector<8x128xf32>
    %62 = arith.addf %58, %61 : vector<8x128xf32>
    %63 = math.tanh %62 : vector<8x128xf32>
    %cst_16 = arith.constant 1.000000e+00 : f32
    %64 = vector.broadcast %cst_16 : f32 to vector<8x128xf32>
    %65 = arith.subf %64, %57 : vector<8x128xf32>
    %66 = arith.mulf %65, %63 : vector<8x128xf32>
    %67 = arith.mulf %57, %39 : vector<8x128xf32>
    %68 = arith.addf %66, %67 : vector<8x128xf32>
    %69 = vector.extract_strided_slice %5 {offsets = [16, 0], sizes = [8, 384], strides = [1, 1]} : vector<64x384xf32> to vector<8x384xf32>
    %cst_17 = arith.constant dense<0.000000e+00> : vector<8x384xf32>
    %70 = tpu.matmul %68, %6, %cst_17 {dimension_numbers = #tpu.dot_dimension_numbers<[1], [0], [0], [1], [0, 0, 1, 1], [], []>} : vector<8x128xf32>, vector<128x384xf32>, vector<8x384xf32> -> vector<8x384xf32>
    %71 = vector.extract_strided_slice %69 {offsets = [0, 0], sizes = [8, 128], strides = [1, 1]} : vector<8x384xf32> to vector<8x128xf32>
    %72 = vector.extract_strided_slice %70 {offsets = [0, 0], sizes = [8, 128], strides = [1, 1]} : vector<8x384xf32> to vector<8x128xf32>
    %73 = arith.addf %71, %72 : vector<8x128xf32>
    %74 = arith.negf %73 : vector<8x128xf32>
    %75 = math.exp %74 : vector<8x128xf32>
    %cst_18 = arith.constant 1.000000e+00 : f32
    %76 = vector.broadcast %cst_18 : f32 to vector<8x128xf32>
    %77 = arith.addf %76, %75 : vector<8x128xf32>
    %78 = arith.divf %76, %77 : vector<8x128xf32>
    %79 = vector.extract_strided_slice %69 {offsets = [0, 128], sizes = [8, 128], strides = [1, 1]} : vector<8x384xf32> to vector<8x128xf32>
    %80 = vector.extract_strided_slice %70 {offsets = [0, 128], sizes = [8, 128], strides = [1, 1]} : vector<8x384xf32> to vector<8x128xf32>
    %81 = arith.addf %79, %80 : vector<8x128xf32>
    %82 = arith.negf %81 : vector<8x128xf32>
    %83 = math.exp %82 : vector<8x128xf32>
    %cst_19 = arith.constant 1.000000e+00 : f32
    %84 = vector.broadcast %cst_19 : f32 to vector<8x128xf32>
    %85 = arith.addf %84, %83 : vector<8x128xf32>
    %86 = arith.divf %84, %85 : vector<8x128xf32>
    %87 = vector.extract_strided_slice %69 {offsets = [0, 256], sizes = [8, 128], strides = [1, 1]} : vector<8x384xf32> to vector<8x128xf32>
    %88 = vector.extract_strided_slice %70 {offsets = [0, 256], sizes = [8, 128], strides = [1, 1]} : vector<8x384xf32> to vector<8x128xf32>
    %89 = arith.addf %88, %9 : vector<8x128xf32>
    %90 = arith.mulf %78, %89 : vector<8x128xf32>
    %91 = arith.addf %87, %90 : vector<8x128xf32>
    %92 = math.tanh %91 : vector<8x128xf32>
    %cst_20 = arith.constant 1.000000e+00 : f32
    %93 = vector.broadcast %cst_20 : f32 to vector<8x128xf32>
    %94 = arith.subf %93, %86 : vector<8x128xf32>
    %95 = arith.mulf %94, %92 : vector<8x128xf32>
    %96 = arith.mulf %86, %68 : vector<8x128xf32>
    %97 = arith.addf %95, %96 : vector<8x128xf32>
    %98 = vector.extract_strided_slice %5 {offsets = [24, 0], sizes = [8, 384], strides = [1, 1]} : vector<64x384xf32> to vector<8x384xf32>
    %cst_21 = arith.constant dense<0.000000e+00> : vector<8x384xf32>
    %99 = tpu.matmul %97, %6, %cst_21 {dimension_numbers = #tpu.dot_dimension_numbers<[1], [0], [0], [1], [0, 0, 1, 1], [], []>} : vector<8x128xf32>, vector<128x384xf32>, vector<8x384xf32> -> vector<8x384xf32>
    %100 = vector.extract_strided_slice %98 {offsets = [0, 0], sizes = [8, 128], strides = [1, 1]} : vector<8x384xf32> to vector<8x128xf32>
    %101 = vector.extract_strided_slice %99 {offsets = [0, 0], sizes = [8, 128], strides = [1, 1]} : vector<8x384xf32> to vector<8x128xf32>
    %102 = arith.addf %100, %101 : vector<8x128xf32>
    %103 = arith.negf %102 : vector<8x128xf32>
    %104 = math.exp %103 : vector<8x128xf32>
    %cst_22 = arith.constant 1.000000e+00 : f32
    %105 = vector.broadcast %cst_22 : f32 to vector<8x128xf32>
    %106 = arith.addf %105, %104 : vector<8x128xf32>
    %107 = arith.divf %105, %106 : vector<8x128xf32>
    %108 = vector.extract_strided_slice %98 {offsets = [0, 128], sizes = [8, 128], strides = [1, 1]} : vector<8x384xf32> to vector<8x128xf32>
    %109 = vector.extract_strided_slice %99 {offsets = [0, 128], sizes = [8, 128], strides = [1, 1]} : vector<8x384xf32> to vector<8x128xf32>
    %110 = arith.addf %108, %109 : vector<8x128xf32>
    %111 = arith.negf %110 : vector<8x128xf32>
    %112 = math.exp %111 : vector<8x128xf32>
    %cst_23 = arith.constant 1.000000e+00 : f32
    %113 = vector.broadcast %cst_23 : f32 to vector<8x128xf32>
    %114 = arith.addf %113, %112 : vector<8x128xf32>
    %115 = arith.divf %113, %114 : vector<8x128xf32>
    %116 = vector.extract_strided_slice %98 {offsets = [0, 256], sizes = [8, 128], strides = [1, 1]} : vector<8x384xf32> to vector<8x128xf32>
    %117 = vector.extract_strided_slice %99 {offsets = [0, 256], sizes = [8, 128], strides = [1, 1]} : vector<8x384xf32> to vector<8x128xf32>
    %118 = arith.addf %117, %9 : vector<8x128xf32>
    %119 = arith.mulf %107, %118 : vector<8x128xf32>
    %120 = arith.addf %116, %119 : vector<8x128xf32>
    %121 = math.tanh %120 : vector<8x128xf32>
    %cst_24 = arith.constant 1.000000e+00 : f32
    %122 = vector.broadcast %cst_24 : f32 to vector<8x128xf32>
    %123 = arith.subf %122, %115 : vector<8x128xf32>
    %124 = arith.mulf %123, %121 : vector<8x128xf32>
    %125 = arith.mulf %115, %97 : vector<8x128xf32>
    %126 = arith.addf %124, %125 : vector<8x128xf32>
    %127 = vector.extract_strided_slice %5 {offsets = [32, 0], sizes = [8, 384], strides = [1, 1]} : vector<64x384xf32> to vector<8x384xf32>
    %cst_25 = arith.constant dense<0.000000e+00> : vector<8x384xf32>
    %128 = tpu.matmul %126, %6, %cst_25 {dimension_numbers = #tpu.dot_dimension_numbers<[1], [0], [0], [1], [0, 0, 1, 1], [], []>} : vector<8x128xf32>, vector<128x384xf32>, vector<8x384xf32> -> vector<8x384xf32>
    %129 = vector.extract_strided_slice %127 {offsets = [0, 0], sizes = [8, 128], strides = [1, 1]} : vector<8x384xf32> to vector<8x128xf32>
    %130 = vector.extract_strided_slice %128 {offsets = [0, 0], sizes = [8, 128], strides = [1, 1]} : vector<8x384xf32> to vector<8x128xf32>
    %131 = arith.addf %129, %130 : vector<8x128xf32>
    %132 = arith.negf %131 : vector<8x128xf32>
    %133 = math.exp %132 : vector<8x128xf32>
    %cst_26 = arith.constant 1.000000e+00 : f32
    %134 = vector.broadcast %cst_26 : f32 to vector<8x128xf32>
    %135 = arith.addf %134, %133 : vector<8x128xf32>
    %136 = arith.divf %134, %135 : vector<8x128xf32>
    %137 = vector.extract_strided_slice %127 {offsets = [0, 128], sizes = [8, 128], strides = [1, 1]} : vector<8x384xf32> to vector<8x128xf32>
    %138 = vector.extract_strided_slice %128 {offsets = [0, 128], sizes = [8, 128], strides = [1, 1]} : vector<8x384xf32> to vector<8x128xf32>
    %139 = arith.addf %137, %138 : vector<8x128xf32>
    %140 = arith.negf %139 : vector<8x128xf32>
    %141 = math.exp %140 : vector<8x128xf32>
    %cst_27 = arith.constant 1.000000e+00 : f32
    %142 = vector.broadcast %cst_27 : f32 to vector<8x128xf32>
    %143 = arith.addf %142, %141 : vector<8x128xf32>
    %144 = arith.divf %142, %143 : vector<8x128xf32>
    %145 = vector.extract_strided_slice %127 {offsets = [0, 256], sizes = [8, 128], strides = [1, 1]} : vector<8x384xf32> to vector<8x128xf32>
    %146 = vector.extract_strided_slice %128 {offsets = [0, 256], sizes = [8, 128], strides = [1, 1]} : vector<8x384xf32> to vector<8x128xf32>
    %147 = arith.addf %146, %9 : vector<8x128xf32>
    %148 = arith.mulf %136, %147 : vector<8x128xf32>
    %149 = arith.addf %145, %148 : vector<8x128xf32>
    %150 = math.tanh %149 : vector<8x128xf32>
    %cst_28 = arith.constant 1.000000e+00 : f32
    %151 = vector.broadcast %cst_28 : f32 to vector<8x128xf32>
    %152 = arith.subf %151, %144 : vector<8x128xf32>
    %153 = arith.mulf %152, %150 : vector<8x128xf32>
    %154 = arith.mulf %144, %126 : vector<8x128xf32>
    %155 = arith.addf %153, %154 : vector<8x128xf32>
    %156 = vector.extract_strided_slice %5 {offsets = [40, 0], sizes = [8, 384], strides = [1, 1]} : vector<64x384xf32> to vector<8x384xf32>
    %cst_29 = arith.constant dense<0.000000e+00> : vector<8x384xf32>
    %157 = tpu.matmul %155, %6, %cst_29 {dimension_numbers = #tpu.dot_dimension_numbers<[1], [0], [0], [1], [0, 0, 1, 1], [], []>} : vector<8x128xf32>, vector<128x384xf32>, vector<8x384xf32> -> vector<8x384xf32>
    %158 = vector.extract_strided_slice %156 {offsets = [0, 0], sizes = [8, 128], strides = [1, 1]} : vector<8x384xf32> to vector<8x128xf32>
    %159 = vector.extract_strided_slice %157 {offsets = [0, 0], sizes = [8, 128], strides = [1, 1]} : vector<8x384xf32> to vector<8x128xf32>
    %160 = arith.addf %158, %159 : vector<8x128xf32>
    %161 = arith.negf %160 : vector<8x128xf32>
    %162 = math.exp %161 : vector<8x128xf32>
    %cst_30 = arith.constant 1.000000e+00 : f32
    %163 = vector.broadcast %cst_30 : f32 to vector<8x128xf32>
    %164 = arith.addf %163, %162 : vector<8x128xf32>
    %165 = arith.divf %163, %164 : vector<8x128xf32>
    %166 = vector.extract_strided_slice %156 {offsets = [0, 128], sizes = [8, 128], strides = [1, 1]} : vector<8x384xf32> to vector<8x128xf32>
    %167 = vector.extract_strided_slice %157 {offsets = [0, 128], sizes = [8, 128], strides = [1, 1]} : vector<8x384xf32> to vector<8x128xf32>
    %168 = arith.addf %166, %167 : vector<8x128xf32>
    %169 = arith.negf %168 : vector<8x128xf32>
    %170 = math.exp %169 : vector<8x128xf32>
    %cst_31 = arith.constant 1.000000e+00 : f32
    %171 = vector.broadcast %cst_31 : f32 to vector<8x128xf32>
    %172 = arith.addf %171, %170 : vector<8x128xf32>
    %173 = arith.divf %171, %172 : vector<8x128xf32>
    %174 = vector.extract_strided_slice %156 {offsets = [0, 256], sizes = [8, 128], strides = [1, 1]} : vector<8x384xf32> to vector<8x128xf32>
    %175 = vector.extract_strided_slice %157 {offsets = [0, 256], sizes = [8, 128], strides = [1, 1]} : vector<8x384xf32> to vector<8x128xf32>
    %176 = arith.addf %175, %9 : vector<8x128xf32>
    %177 = arith.mulf %165, %176 : vector<8x128xf32>
    %178 = arith.addf %174, %177 : vector<8x128xf32>
    %179 = math.tanh %178 : vector<8x128xf32>
    %cst_32 = arith.constant 1.000000e+00 : f32
    %180 = vector.broadcast %cst_32 : f32 to vector<8x128xf32>
    %181 = arith.subf %180, %173 : vector<8x128xf32>
    %182 = arith.mulf %181, %179 : vector<8x128xf32>
    %183 = arith.mulf %173, %155 : vector<8x128xf32>
    %184 = arith.addf %182, %183 : vector<8x128xf32>
    %185 = vector.extract_strided_slice %5 {offsets = [48, 0], sizes = [8, 384], strides = [1, 1]} : vector<64x384xf32> to vector<8x384xf32>
    %cst_33 = arith.constant dense<0.000000e+00> : vector<8x384xf32>
    %186 = tpu.matmul %184, %6, %cst_33 {dimension_numbers = #tpu.dot_dimension_numbers<[1], [0], [0], [1], [0, 0, 1, 1], [], []>} : vector<8x128xf32>, vector<128x384xf32>, vector<8x384xf32> -> vector<8x384xf32>
    %187 = vector.extract_strided_slice %185 {offsets = [0, 0], sizes = [8, 128], strides = [1, 1]} : vector<8x384xf32> to vector<8x128xf32>
    %188 = vector.extract_strided_slice %186 {offsets = [0, 0], sizes = [8, 128], strides = [1, 1]} : vector<8x384xf32> to vector<8x128xf32>
    %189 = arith.addf %187, %188 : vector<8x128xf32>
    %190 = arith.negf %189 : vector<8x128xf32>
    %191 = math.exp %190 : vector<8x128xf32>
    %cst_34 = arith.constant 1.000000e+00 : f32
    %192 = vector.broadcast %cst_34 : f32 to vector<8x128xf32>
    %193 = arith.addf %192, %191 : vector<8x128xf32>
    %194 = arith.divf %192, %193 : vector<8x128xf32>
    %195 = vector.extract_strided_slice %185 {offsets = [0, 128], sizes = [8, 128], strides = [1, 1]} : vector<8x384xf32> to vector<8x128xf32>
    %196 = vector.extract_strided_slice %186 {offsets = [0, 128], sizes = [8, 128], strides = [1, 1]} : vector<8x384xf32> to vector<8x128xf32>
    %197 = arith.addf %195, %196 : vector<8x128xf32>
    %198 = arith.negf %197 : vector<8x128xf32>
    %199 = math.exp %198 : vector<8x128xf32>
    %cst_35 = arith.constant 1.000000e+00 : f32
    %200 = vector.broadcast %cst_35 : f32 to vector<8x128xf32>
    %201 = arith.addf %200, %199 : vector<8x128xf32>
    %202 = arith.divf %200, %201 : vector<8x128xf32>
    %203 = vector.extract_strided_slice %185 {offsets = [0, 256], sizes = [8, 128], strides = [1, 1]} : vector<8x384xf32> to vector<8x128xf32>
    %204 = vector.extract_strided_slice %186 {offsets = [0, 256], sizes = [8, 128], strides = [1, 1]} : vector<8x384xf32> to vector<8x128xf32>
    %205 = arith.addf %204, %9 : vector<8x128xf32>
    %206 = arith.mulf %194, %205 : vector<8x128xf32>
    %207 = arith.addf %203, %206 : vector<8x128xf32>
    %208 = math.tanh %207 : vector<8x128xf32>
    %cst_36 = arith.constant 1.000000e+00 : f32
    %209 = vector.broadcast %cst_36 : f32 to vector<8x128xf32>
    %210 = arith.subf %209, %202 : vector<8x128xf32>
    %211 = arith.mulf %210, %208 : vector<8x128xf32>
    %212 = arith.mulf %202, %184 : vector<8x128xf32>
    %213 = arith.addf %211, %212 : vector<8x128xf32>
    %214 = vector.extract_strided_slice %5 {offsets = [56, 0], sizes = [8, 384], strides = [1, 1]} : vector<64x384xf32> to vector<8x384xf32>
    %cst_37 = arith.constant dense<0.000000e+00> : vector<8x384xf32>
    %215 = tpu.matmul %213, %6, %cst_37 {dimension_numbers = #tpu.dot_dimension_numbers<[1], [0], [0], [1], [0, 0, 1, 1], [], []>} : vector<8x128xf32>, vector<128x384xf32>, vector<8x384xf32> -> vector<8x384xf32>
    %216 = vector.extract_strided_slice %214 {offsets = [0, 0], sizes = [8, 128], strides = [1, 1]} : vector<8x384xf32> to vector<8x128xf32>
    %217 = vector.extract_strided_slice %215 {offsets = [0, 0], sizes = [8, 128], strides = [1, 1]} : vector<8x384xf32> to vector<8x128xf32>
    %218 = arith.addf %216, %217 : vector<8x128xf32>
    %219 = arith.negf %218 : vector<8x128xf32>
    %220 = math.exp %219 : vector<8x128xf32>
    %cst_38 = arith.constant 1.000000e+00 : f32
    %221 = vector.broadcast %cst_38 : f32 to vector<8x128xf32>
    %222 = arith.addf %221, %220 : vector<8x128xf32>
    %223 = arith.divf %221, %222 : vector<8x128xf32>
    %224 = vector.extract_strided_slice %214 {offsets = [0, 128], sizes = [8, 128], strides = [1, 1]} : vector<8x384xf32> to vector<8x128xf32>
    %225 = vector.extract_strided_slice %215 {offsets = [0, 128], sizes = [8, 128], strides = [1, 1]} : vector<8x384xf32> to vector<8x128xf32>
    %226 = arith.addf %224, %225 : vector<8x128xf32>
    %227 = arith.negf %226 : vector<8x128xf32>
    %228 = math.exp %227 : vector<8x128xf32>
    %cst_39 = arith.constant 1.000000e+00 : f32
    %229 = vector.broadcast %cst_39 : f32 to vector<8x128xf32>
    %230 = arith.addf %229, %228 : vector<8x128xf32>
    %231 = arith.divf %229, %230 : vector<8x128xf32>
    %232 = vector.extract_strided_slice %214 {offsets = [0, 256], sizes = [8, 128], strides = [1, 1]} : vector<8x384xf32> to vector<8x128xf32>
    %233 = vector.extract_strided_slice %215 {offsets = [0, 256], sizes = [8, 128], strides = [1, 1]} : vector<8x384xf32> to vector<8x128xf32>
    %234 = arith.addf %233, %9 : vector<8x128xf32>
    %235 = arith.mulf %223, %234 : vector<8x128xf32>
    %236 = arith.addf %232, %235 : vector<8x128xf32>
    %237 = math.tanh %236 : vector<8x128xf32>
    %cst_40 = arith.constant 1.000000e+00 : f32
    %238 = vector.broadcast %cst_40 : f32 to vector<8x128xf32>
    %239 = arith.subf %238, %231 : vector<8x128xf32>
    %240 = arith.mulf %239, %237 : vector<8x128xf32>
    %241 = arith.mulf %231, %213 : vector<8x128xf32>
    %242 = arith.addf %240, %241 : vector<8x128xf32>
    %cst_41 = arith.constant 0.000000e+00 : f32
    %243 = vector.broadcast %cst_41 : f32 to vector<8x128xf32>
    %244 = arith.maximumf %242, %243 : vector<8x128xf32>
    %c0_42 = arith.constant 0 : index
    %c0_43 = arith.constant 0 : index
    %245 = vector.load %arg3[%c0_42, %c0_43] : memref<128x128xf32, #tpu.memory_space<vmem>>, vector<128x128xf32>
    %cst_44 = arith.constant dense<0.000000e+00> : vector<8x128xf32>
    %246 = tpu.matmul %244, %245, %cst_44 {dimension_numbers = #tpu.dot_dimension_numbers<[1], [0], [0], [1], [0, 0, 1, 1], [], []>} : vector<8x128xf32>, vector<128x128xf32>, vector<8x128xf32> -> vector<8x128xf32>
    %c2 = arith.constant 2 : index
    %c0_45 = arith.constant 0 : index
    %247 = vector.load %arg4[%c2, %c0_45] : memref<8x384xf32, #tpu.memory_space<vmem>>, vector<1x128xf32>
    %248 = vector.broadcast %247 : vector<1x128xf32> to vector<8x128xf32>
    %249 = arith.addf %246, %248 : vector<8x128xf32>
    %250 = arith.mulf %249, %249 : vector<8x128xf32>
    %cst_46 = arith.constant dense<0.000000e+00> : vector<8xf32>
    %251 = vector.multi_reduction <add>, %250, %cst_46 [1] : vector<8x128xf32> to vector<8xf32>
    %252 = vector.shape_cast %251 : vector<8xf32> to vector<8x1xf32>
    %cst_47 = arith.constant 1.000000e-24 : f32
    %253 = vector.broadcast %cst_47 : f32 to vector<8x1xf32>
    %254 = arith.maximumf %252, %253 : vector<8x1xf32>
    %255 = math.rsqrt %254 : vector<8x1xf32>
    %256 = vector.broadcast %255 : vector<8x1xf32> to vector<8x128xf32>
    %257 = arith.mulf %249, %256 : vector<8x128xf32>
    %c0_48 = arith.constant 0 : index
    %c0_49 = arith.constant 0 : index
    %258 = vector.load %arg5[%c0_48, %c0_49] : memref<8x128xf32, #tpu.memory_space<vmem>>, vector<8x128xf32>
    tpu.vector_store %arg5[%c0_48, %c0_49], %257 {strides = array<i32>} : memref<8x128xf32, #tpu.memory_space<vmem>>, vector<8x128xf32>,
    return
  }
}

</mosaic_0001>

<llo_original>
// kernel: tpu_custom_call.1
$region0: #{tpu_custom_call.1}
  #allocation0 [shape = 'u32[]', space=smem, size = 0x4, offset = 0x4, fixed_abs, tag = 'smem constant byte address 0x4 - core index']
  #allocation1 [shape = 'u32[144,128]{1,0:T(1,128)}', space=vmem, size = 0x12000, scoped, tag = 'internal scratch']
  %s0 = inlined_call_operand.vmem [shape: f32[64,4], index: 0, kind: input, shape index: {}]
  %s1 = inlined_call_operand.vmem [shape: f32[4,384], index: 1, kind: input, shape index: {}]
  %s2 = inlined_call_operand.hbm [shape: f32[128,384], index: 2, kind: input, shape index: {}]
  %s3 = inlined_call_operand.hbm [shape: f32[128,128], index: 3, kind: input, shape index: {}]
  %s4 = inlined_call_operand.vmem [shape: f32[8,384], index: 4, kind: input, shape index: {}]
  %s5 = inlined_call_operand.hbm [shape: f32[8,128], index: 5, kind: output, shape index: {}]
  %s6 = sld [smem:[#allocation0]]
  $region38: #{tpu_custom_call.1} parent=0
    _
  %s8 = ssub.s32 1, %s6
  %s9 = scalar_select 0, %s8, %s6
  $region1: #{tpu_custom_call.1} parent=0
    #allocation2 [shape = 'u8[196608]{0}', space=vmem, size = 0x30000, scoped, tag = 'input window, operand 2, single buffered']
    #allocation3 [shape = 's32[1]{0}', space=sflag, size = 0x4, scoped, tag = 'scoped memory for tpu_custom_call.1']
    #allocation4 [shape = 's32[1]{0}', space=sflag, size = 0x4, scoped, tag = 'scoped memory for tpu_custom_call.1']
    #allocation5 [shape = 'u8[65536]{0}', space=vmem, size = 0x10000, scoped, tag = 'input window, operand 3, single buffered']
    #allocation6 [shape = 's32[1]{0}', space=sflag, size = 0x4, scoped, tag = 'scoped memory for tpu_custom_call.1']
    #allocation7 [shape = 'u8[4096]{0}', space=vmem, size = 0x1000, scoped, tag = 'output window, operand 0, single buffered']
    %10 = vsyncpa [#allocation3], 0
    %11 = vsyncpa [#allocation6], 0
    %12 = vsyncpa [#allocation4], 0
    // Predicated region
    $region2: #{tpu_custom_call.1} parent=1 // pred_check
      _
    $region3: #{tpu_custom_call.1} parent=1 // pred_check_branch
      %14 = sbr.rel (0) target = $region5
    $region4: #{tpu_custom_call.1} parent=1 // pred_region
      _
    $region5: #{tpu_custom_call.1} parent=1 // pred_fallthru
      _
    // Predicated region
    $region6: #{tpu_custom_call.1} parent=1 // pred_check
      _
    $region7: #{tpu_custom_call.1} parent=1 // pred_check_branch
      %16 = sbr.rel (0) target = $region9
    $region8: #{tpu_custom_call.1} parent=1 // pred_region
      _
    $region9: #{tpu_custom_call.1} parent=1 // pred_fallthru
      _
    // Predicated region
    $region10: #{tpu_custom_call.1} parent=1 // pred_check
      _
    $region11: #{tpu_custom_call.1} parent=1 // pred_check_branch
      %18 = sbr.rel (0) target = $region13
    $region12: #{tpu_custom_call.1} parent=1 // pred_region
      %s20 = ssub.s32 6144, 6144
      %21 = vsyncadd [#allocation3], %s20
      %s22 = sshll.u32 [#allocation2], 4
      %s23 = int_to_ptr.vmem [resolvable:$true] %s22
      %28 = dma.hbm_to_vmem [thread:$0]  %s2, 6144, %s23, [#allocation3], 384, 384, 24
    $region13: #{tpu_custom_call.1} parent=1 // pred_fallthru
      _
    // Predicated region
    $region14: #{tpu_custom_call.1} parent=1 // pred_check
      _
    $region15: #{tpu_custom_call.1} parent=1 // pred_check_branch
      %30 = sbr.rel (0) target = $region17
    $region16: #{tpu_custom_call.1} parent=1 // pred_region
      %s32 = ssub.s32 2048, 2048
      %33 = vsyncadd [#allocation6], %s32
      %s34 = sshll.u32 [#allocation5], 4
      %s35 = int_to_ptr.vmem [resolvable:$true] %s34
      %40 = dma.hbm_to_vmem [thread:$0]  %s3, 2048, %s35, [#allocation6], 128, 128, 8
    $region17: #{tpu_custom_call.1} parent=1 // pred_fallthru
      _
    // Predicated region
    $region18: #{tpu_custom_call.1} parent=1 // pred_check
      _
    $region19: #{tpu_custom_call.1} parent=1 // pred_check_branch
      %42 = sbr.rel (0) target = $region21
    $region20: #{tpu_custom_call.1} parent=1 // pred_region
      _
    $region21: #{tpu_custom_call.1} parent=1 // pred_fallthru
      _
    // Predicated region
    $region22: #{tpu_custom_call.1} parent=1 // pred_check
      _
    $region23: #{tpu_custom_call.1} parent=1 // pred_check_branch
      %44 = sbr.rel (0) target = $region25
    $region24: #{tpu_custom_call.1} parent=1 // pred_region
      %45 = dma.done [#allocation3], 6144
    $region25: #{tpu_custom_call.1} parent=1 // pred_fallthru
      _
    // Predicated region
    $region26: #{tpu_custom_call.1} parent=1 // pred_check
      _
    $region27: #{tpu_custom_call.1} parent=1 // pred_check_branch
      %47 = sbr.rel (0) target = $region29
    $region28: #{tpu_custom_call.1} parent=1 // pred_region
      %48 = dma.done [#allocation6], 2048
    $region29: #{tpu_custom_call.1} parent=1 // pred_fallthru
      _
    %v49 = vld [vmem:[%s0] sm:$0xff]
    %v50 = vld [vmem:[%s0 + $0x8] sm:$0xff]
    %v51 = vld [vmem:[%s0 + $0x10] sm:$0xff]
    %v52 = vld [vmem:[%s0 + $0x18] sm:$0xff]
    %v53 = vld [vmem:[%s0 + $0x20] sm:$0xff]
    %v54 = vld [vmem:[%s0 + $0x28] sm:$0xff]
    %v55 = vld [vmem:[%s0 + $0x30] sm:$0xff]
    %v56 = vld [vmem:[%s0 + $0x38] sm:$0xff]
    %v57 = vld [vmem:[%s1] sm:$0xff]
    %v58 = vld [vmem:[%s1 + $0x8] sm:$0xf]
    %v59 = vld [vmem:[%s4] ss:$8 sm:$0x7]
    %v61 = vlaneseq
    %v62 = vshrl.u32 %v61, 7
    %v63 = vsub.s32 0, %v62
    %v64 = vrot.slane %v59, %v63
    %v65 = vlaneseq
    %v66 = vshrl.u32 %v65, 7
    %v67 = vsub.s32 1, %v66
    %v68 = vrot.slane %v59, %v67
    %v69 = vlaneseq
    %v70 = vshrl.u32 %v69, 7
    %v71 = vsub.s32 2, %v70
    %v72 = vrot.slane %v59, %v71
    %v78 = vcombine.high %v57, %v57
    %vm79 = vcmask 31744
    %v81 = vsel %vm79, %v49, 0
    %v84 = vsel %vm79, %v50, 0
    %v87 = vsel %vm79, %v51, 0
    %v90 = vsel %vm79, %v52, 0
    %v93 = vsel %vm79, %v53, 0
    %v96 = vsel %vm79, %v54, 0
    %v99 = vsel %vm79, %v55, 0
    %v102 = vsel %vm79, %v56, 0
    %vm104 = vcmask 1043456
    %v105 = vsel %vm104, %v57, 0
    %v107 = vsel %vm104, %v78, 0
    %v109 = vsel %vm104, %v58, 0
    %111 = vmatprep.subr.mxu0 %v107
    %112 = vmatpush1.msra.mxu0 %v105
    %113 = vmatprep.subr.mxu0 0.0
    %114 = vmatpush1.msra.mxu0 0.0
    %115 = vmatprep.subr.mxu0 0.0
    %116 = vmatpush1.msra.mxu0 0.0
    %117 = vmatprep.subr.mxu0 0.0
    %118 = vmatpush1.msra.mxu0 0.0
    %119 = vmatprep.subr.mxu0 0.0
    %120 = vmatpush1.msra.mxu0 0.0
    %121 = vmatprep.subr.mxu0 0.0
    %122 = vmatpush1.msra.mxu0 0.0
    %123 = vmatprep.subr.mxu0 0.0
    %124 = vmatpush1.msra.mxu0 0.0
    %125 = vmatprep.subr.mxu0 0.0
    %126 = vmatpush1.msra.mxu0 0.0
    %127 = vmatprep.subr.mxu0 0.0
    %128 = vmatpush1.msra.mxu0 0.0
    %129 = vmatprep.subr.mxu0 0.0
    %130 = vmatpush1.msra.mxu0 0.0
    %131 = vmatprep.subr.mxu0 0.0
    %132 = vmatpush1.msra.mxu0 0.0
    %133 = vmatprep.subr.mxu0 0.0
    %134 = vmatpush1.msra.mxu0 0.0
    %135 = vmatprep.subr.mxu0 0.0
    %136 = vmatpush1.msra.mxu0 0.0
    %137 = vmatprep.subr.mxu0 0.0
    %138 = vmatpush1.msra.mxu0 0.0
    %139 = vmatprep.subr.mxu0 0.0
    %140 = vmatpush1.msra.mxu0 0.0
    %141 = vmatprep.subr.mxu0 0.0
    %142 = vmatpush1.msra.mxu0 0.0
    %143 = vmatprep.subr.mxu0 0.0
    %144 = vmatpush1.msra.mxu0 0.0
    %145 = vmatprep.subr.mxu0 0.0
    %146 = vmatpush1.msra.mxu0 0.0
    %147 = vmatprep.subr.mxu0 0.0
    %148 = vmatpush1.msra.mxu0 0.0
    %149 = vmatprep.subr.mxu0 0.0
    %150 = vmatpush1.msra.mxu0 0.0
    %151 = vmatprep.subr.mxu0 0.0
    %152 = vmatpush1.msra.mxu0 0.0
    %153 = vmatprep.subr.mxu0 0.0
    %154 = vmatpush1.msra.mxu0 0.0
    %155 = vmatprep.subr.mxu0 0.0
    %156 = vmatpush1.msra.mxu0 0.0
    %157 = vmatprep.subr.mxu0 0.0
    %158 = vmatpush1.msra.mxu0 0.0
    %159 = vmatprep.subr.mxu0 0.0
    %160 = vmatpush1.msra.mxu0 0.0
    %161 = vmatprep.subr.mxu0 0.0
    %162 = vmatpush1.msra.mxu0 0.0
    %163 = vmatprep.subr.mxu0 0.0
    %164 = vmatpush1.msra.mxu0 0.0
    %165 = vmatprep.subr.mxu0 0.0
    %166 = vmatpush1.msra.mxu0 0.0
    %167 = vmatprep.subr.mxu0 0.0
    %168 = vmatpush1.msra.mxu0 0.0
    %169 = vmatprep.subr.mxu0 0.0
    %170 = vmatpush1.msra.mxu0 0.0
    %171 = vmatprep.subr.mxu0 0.0
    %172 = vmatpush1.msra.mxu0 0.0
    %173 = vmatprep.subr.mxu0 0.0
    %174 = vmatpush1.msra.mxu0 0.0
    %175 = vmatprep.mubr.f32.mxu0 0.0
    %176 = vmatmul.mubr.f32.gmra.mrb[0].mxu0 %v81
    %v177 = vpop.f32.mrb[0].mxu0
    %v178 = vadd.f32 %v64, %v177
    %v179 = vpop.f32.mrb[0].mxu0
    %v180 = vadd.f32 %v68, %v179
    %181 = vmatprep.mubr.f32.mxu0 0.0
    %182 = vmatmul.mubr.f32.gmra.mrb[0].mxu0 %v84
    %v183 = vpop.f32.mrb[0].mxu0
    %v184 = vadd.f32 %v64, %v183
    %v185 = vpop.f32.mrb[0].mxu0
    %v186 = vadd.f32 %v68, %v185
    %187 = vmatprep.mubr.f32.mxu0 0.0
    %188 = vmatmul.mubr.f32.gmra.mrb[0].mxu0 %v87
    %v189 = vpop.f32.mrb[0].mxu0
    %v190 = vadd.f32 %v64, %v189
    %v191 = vpop.f32.mrb[0].mxu0
    %v192 = vadd.f32 %v68, %v191
    %193 = vmatprep.mubr.f32.mxu0 0.0
    %194 = vmatmul.mubr.f32.gmra.mrb[0].mxu0 %v90
    %v195 = vpop.f32.mrb[0].mxu0
    %v196 = vadd.f32 %v64, %v195
    %v197 = vpop.f32.mrb[0].mxu0
    %v198 = vadd.f32 %v68, %v197
    %199 = vmatprep.mubr.f32.mxu0 0.0
    %200 = vmatmul.mubr.f32.gmra.mrb[0].mxu0 %v93
    %v201 = vpop.f32.mrb[0].mxu0
    %v202 = vadd.f32 %v64, %v201
    %v203 = vpop.f32.mrb[0].mxu0
    %v204 = vadd.f32 %v68, %v203
    %205 = vmatprep.mubr.f32.mxu0 0.0
    %206 = vmatmul.mubr.f32.gmra.mrb[0].mxu0 %v96
    %v207 = vpop.f32.mrb[0].mxu0
    %v208 = vadd.f32 %v64, %v207
    %v209 = vpop.f32.mrb[0].mxu0
    %v210 = vadd.f32 %v68, %v209
    %211 = vmatprep.mubr.f32.mxu0 0.0
    %212 = vmatmul.mubr.f32.gmra.mrb[0].mxu0 %v99
    %v213 = vpop.f32.mrb[0].mxu0
    %v214 = vadd.f32 %v64, %v213
    %v215 = vpop.f32.mrb[0].mxu0
    %v216 = vadd.f32 %v68, %v215
    %217 = vmatprep.mubr.f32.mxu0 0.0
    %218 = vmatmul.mubr.f32.gmra.mrb[0].mxu0 %v102
    %v219 = vpop.f32.mrb[0].mxu0
    %v220 = vadd.f32 %v64, %v219
    %v221 = vpop.f32.mrb[0].mxu0
    %v222 = vadd.f32 %v68, %v221
    %223 = vdwg.mxu0
    %224 = vmatprep.subr.mxu0 0.0
    %225 = vmatpush1.msra.mxu0 %v109
    %226 = vmatprep.subr.mxu0 0.0
    %227 = vmatpush1.msra.mxu0 0.0
    %228 = vmatprep.subr.mxu0 0.0
    %229 = vmatpush1.msra.mxu0 0.0
    %230 = vmatprep.subr.mxu0 0.0
    %231 = vmatpush1.msra.mxu0 0.0
    %232 = vmatprep.subr.mxu0 0.0
    %233 = vmatpush1.msra.mxu0 0.0
    %234 = vmatprep.subr.mxu0 0.0
    %235 = vmatpush1.msra.mxu0 0.0
    %236 = vmatprep.subr.mxu0 0.0
    %237 = vmatpush1.msra.mxu0 0.0
    %238 = vmatprep.subr.mxu0 0.0
    %239 = vmatpush1.msra.mxu0 0.0
    %240 = vmatprep.subr.mxu0 0.0
    %241 = vmatpush1.msra.mxu0 0.0
    %242 = vmatprep.subr.mxu0 0.0
    %243 = vmatpush1.msra.mxu0 0.0
    %244 = vmatprep.subr.mxu0 0.0
    %245 = vmatpush1.msra.mxu0 0.0
    %246 = vmatprep.subr.mxu0 0.0
    %247 = vmatpush1.msra.mxu0 0.0
    %248 = vmatprep.subr.mxu0 0.0
    %249 = vmatpush1.msra.mxu0 0.0
    %250 = vmatprep.subr.mxu0 0.0
    %251 = vmatpush1.msra.mxu0 0.0
    %252 = vmatprep.subr.mxu0 0.0
    %253 = vmatpush1.msra.mxu0 0.0
    %254 = vmatprep.subr.mxu0 0.0
    %255 = vmatpush1.msra.mxu0 0.0
    %256 = vmatprep.subr.mxu0 0.0
    %257 = vmatpush1.msra.mxu0 0.0
    %258 = vmatprep.subr.mxu0 0.0
    %259 = vmatpush1.msra.mxu0 0.0
    %260 = vmatprep.subr.mxu0 0.0
    %261 = vmatpush1.msra.mxu0 0.0
    %262 = vmatprep.subr.mxu0 0.0
    %263 = vmatpush1.msra.mxu0 0.0
    %264 = vmatprep.subr.mxu0 0.0
    %265 = vmatpush1.msra.mxu0 0.0
    %266 = vmatprep.subr.mxu0 0.0
    %267 = vmatpush1.msra.mxu0 0.0
    %268 = vmatprep.subr.mxu0 0.0
    %269 = vmatpush1.msra.mxu0 0.0
    %270 = vmatprep.subr.mxu0 0.0
    %271 = vmatpush1.msra.mxu0 0.0
    %272 = vmatprep.subr.mxu0 0.0
    %273 = vmatpush1.msra.mxu0 0.0
    %274 = vmatprep.subr.mxu0 0.0
    %275 = vmatpush1.msra.mxu0 0.0
    %276 = vmatprep.subr.mxu0 0.0
    %277 = vmatpush1.msra.mxu0 0.0
    %278 = vmatprep.subr.mxu0 0.0
    %279 = vmatpush1.msra.mxu0 0.0
    %280 = vmatprep.subr.mxu0 0.0
    %281 = vmatpush1.msra.mxu0 0.0
    %282 = vmatprep.subr.mxu0 0.0
    %283 = vmatpush1.msra.mxu0 0.0
    %284 = vmatprep.subr.mxu0 0.0
    %285 = vmatpush1.msra.mxu0 0.0
    %286 = vmatprep.subr.mxu0 0.0
    %287 = vmatpush1.msra.mxu0 0.0
    %288 = vmatprep.mubr.f32.mxu0 0.0
    %289 = vmatmul.mubr.f32.gmra.mrb[0].mxu0 %v81
    %v290 = vpop.f32.mrb[0].mxu0
    %v291 = vadd.f32 %v72, %v290
    %v292 = vpop.f32.mrb[0].mxu0
    %293 = vmatprep.mubr.f32.mxu0 0.0
    %294 = vmatmul.mubr.f32.gmra.mrb[0].mxu0 %v84
    %v295 = vpop.f32.mrb[0].mxu0
    %v296 = vadd.f32 %v72, %v295
    %v297 = vpop.f32.mrb[0].mxu0
    %298 = vmatprep.mubr.f32.mxu0 0.0
    %299 = vmatmul.mubr.f32.gmra.mrb[0].mxu0 %v87
    %v300 = vpop.f32.mrb[0].mxu0
    %v301 = vadd.f32 %v72, %v300
    %v302 = vpop.f32.mrb[0].mxu0
    %303 = vmatprep.mubr.f32.mxu0 0.0
    %304 = vmatmul.mubr.f32.gmra.mrb[0].mxu0 %v90
    %v305 = vpop.f32.mrb[0].mxu0
    %v306 = vadd.f32 %v72, %v305
    %v307 = vpop.f32.mrb[0].mxu0
    %308 = vmatprep.mubr.f32.mxu0 0.0
    %309 = vmatmul.mubr.f32.gmra.mrb[0].mxu0 %v93
    %v310 = vpop.f32.mrb[0].mxu0
    %v311 = vadd.f32 %v72, %v310
    %v312 = vpop.f32.mrb[0].mxu0
    %313 = vmatprep.mubr.f32.mxu0 0.0
    %314 = vmatmul.mubr.f32.gmra.mrb[0].mxu0 %v96
    %v315 = vpop.f32.mrb[0].mxu0
    %v316 = vadd.f32 %v72, %v315
    %v317 = vpop.f32.mrb[0].mxu0
    %318 = vmatprep.mubr.f32.mxu0 0.0
    %319 = vmatmul.mubr.f32.gmra.mrb[0].mxu0 %v99
    %v320 = vpop.f32.mrb[0].mxu0
    %v321 = vadd.f32 %v72, %v320
    %v322 = vpop.f32.mrb[0].mxu0
    %323 = vmatprep.mubr.f32.mxu0 0.0
    %324 = vmatmul.mubr.f32.gmra.mrb[0].mxu0 %v102
    %v325 = vpop.f32.mrb[0].mxu0
    %v326 = vadd.f32 %v72, %v325
    %v327 = vpop.f32.mrb[0].mxu0
    %328 = vdwg.mxu0
    %v329 = vld [vmem:[#allocation2] sm:$0xff]
    %v330 = vld [vmem:[#allocation2 + $0x8] sm:$0xff]
    %v331 = vld [vmem:[#allocation2 + $0x10] sm:$0xff]
    %v332 = vld [vmem:[#allocation2 + $0x18] sm:$0xff]
    %v333 = vld [vmem:[#allocation2 + $0x20] sm:$0xff]
    %v334 = vld [vmem:[#allocation2 + $0x28] sm:$0xff]
    %v335 = vld [vmem:[#allocation2 + $0x30] sm:$0xff]
    %v336 = vld [vmem:[#allocation2 + $0x38] sm:$0xff]
    %v337 = vld [vmem:[#allocation2 + $0x40] sm:$0xff]
    %v338 = vld [vmem:[#allocation2 + $0x48] sm:$0xff]
    %v339 = vld [vmem:[#allocation2 + $0x50] sm:$0xff]
    %v340 = vld [vmem:[#allocation2 + $0x58] sm:$0xff]
    %v341 = vld [vmem:[#allocation2 + $0x60] sm:$0xff]
    %v342 = vld [vmem:[#allocation2 + $0x68] sm:$0xff]
    %v343 = vld [vmem:[#allocation2 + $0x70] sm:$0xff]
    %v344 = vld [vmem:[#allocation2 + $0x78] sm:$0xff]
    %v345 = vld [vmem:[#allocation2 + $0x80] sm:$0xff]
    %v346 = vld [vmem:[#allocation2 + $0x88] sm:$0xff]
    %v347 = vld [vmem:[#allocation2 + $0x90] sm:$0xff]
    %v348 = vld [vmem:[#allocation2 + $0x98] sm:$0xff]
    %v349 = vld [vmem:[#allocation2 + $0xa0] sm:$0xff]
    %v350 = vld [vmem:[#allocation2 + $0xa8] sm:$0xff]
    %v351 = vld [vmem:[#allocation2 + $0xb0] sm:$0xff]
    %v352 = vld [vmem:[#allocation2 + $0xb8] sm:$0xff]
    %v353 = vld [vmem:[#allocation2 + $0xc0] sm:$0xff]
    %v354 = vld [vmem:[#allocation2 + $0xc8] sm:$0xff]
    %v355 = vld [vmem:[#allocation2 + $0xd0] sm:$0xff]
    %v356 = vld [vmem:[#allocation2 + $0xd8] sm:$0xff]
    %v357 = vld [vmem:[#allocation2 + $0xe0] sm:$0xff]
    %v358 = vld [vmem:[#allocation2 + $0xe8] sm:$0xff]
    %v359 = vld [vmem:[#allocation2 + $0xf0] sm:$0xff]
    %v360 = vld [vmem:[#allocation2 + $0xf8] sm:$0xff]
    %v361 = vld [vmem:[#allocation2 + $0x100] sm:$0xff]
    %v362 = vld [vmem:[#allocation2 + $0x108] sm:$0xff]
    %v363 = vld [vmem:[#allocation2 + $0x110] sm:$0xff]
    %v364 = vld [vmem:[#allocation2 + $0x118] sm:$0xff]
    %v365 = vld [vmem:[#allocation2 + $0x120] sm:$0xff]
    %v366 = vld [vmem:[#allocation2 + $0x128] sm:$0xff]
    %v367 = vld [vmem:[#allocation2 + $0x130] sm:$0xff]
    %v368 = vld [vmem:[#allocation2 + $0x138] sm:$0xff]
    %v369 = vld [vmem:[#allocation2 + $0x140] sm:$0xff]
    %v370 = vld [vmem:[#allocation2 + $0x148] sm:$0xff]
    %v371 = vld [vmem:[#allocation2 + $0x150] sm:$0xff]
    %v372 = vld [vmem:[#allocation2 + $0x158] sm:$0xff]
    %v373 = vld [vmem:[#allocation2 + $0x160] sm:$0xff]
    %v374 = vld [vmem:[#allocation2 + $0x168] sm:$0xff]
    %v375 = vld [vmem:[#allocation2 + $0x170] sm:$0xff]
    %v376 = vld [vmem:[#allocation2 + $0x178] sm:$0xff]
    %v377 = vld [vmem:[%s4 + $0x1] ss:$0 sm:$0xff]
    %378 = vmatprep.subr.mxu0 %v330
    %379 = vmatpush1.msra.mxu0 %v329
    %380 = vmatprep.subr.mxu0 %v333
    %381 = vmatpush1.msra.mxu0 %v332
    %382 = vmatprep.subr.mxu0 %v336
    %383 = vmatpush1.msra.mxu0 %v335
    %384 = vmatprep.subr.mxu0 %v339
    %385 = vmatpush1.msra.mxu0 %v338
    %386 = vmatprep.subr.mxu0 %v342
    %387 = vmatpush1.msra.mxu0 %v341
    %388 = vmatprep.subr.mxu0 %v345
    %389 = vmatpush1.msra.mxu0 %v344
    %390 = vmatprep.subr.mxu0 %v348
    %391 = vmatpush1.msra.mxu0 %v347
    %392 = vmatprep.subr.mxu0 %v351
    %393 = vmatpush1.msra.mxu0 %v350
    %394 = vmatprep.subr.mxu0 %v354
    %395 = vmatpush1.msra.mxu0 %v353
    %396 = vmatprep.subr.mxu0 %v357
    %397 = vmatpush1.msra.mxu0 %v356
    %398 = vmatprep.subr.mxu0 %v360
    %399 = vmatpush1.msra.mxu0 %v359
    %400 = vmatprep.subr.mxu0 %v363
    %401 = vmatpush1.msra.mxu0 %v362
    %402 = vmatprep.subr.mxu0 %v366
    %403 = vmatpush1.msra.mxu0 %v365
    %404 = vmatprep.subr.mxu0 %v369
    %405 = vmatpush1.msra.mxu0 %v368
    %406 = vmatprep.subr.mxu0 %v372
    %407 = vmatpush1.msra.mxu0 %v371
    %408 = vmatprep.subr.mxu0 %v375
    %409 = vmatpush1.msra.mxu0 %v374
    %410 = vmatprep.subr.mxu0 0.0
    %411 = vmatpush1.msra.mxu0 0.0
    %412 = vmatprep.subr.mxu0 0.0
    %413 = vmatpush1.msra.mxu0 0.0
    %414 = vmatprep.subr.mxu0 0.0
    %415 = vmatpush1.msra.mxu0 0.0
    %416 = vmatprep.subr.mxu0 0.0
    %417 = vmatpush1.msra.mxu0 0.0
    %418 = vmatprep.subr.mxu0 0.0
    %419 = vmatpush1.msra.mxu0 0.0
    %420 = vmatprep.subr.mxu0 0.0
    %421 = vmatpush1.msra.mxu0 0.0
    %422 = vmatprep.subr.mxu0 0.0
    %423 = vmatpush1.msra.mxu0 0.0
    %424 = vmatprep.subr.mxu0 0.0
    %425 = vmatpush1.msra.mxu0 0.0
    %426 = vmatprep.subr.mxu0 0.0
    %427 = vmatpush1.msra.mxu0 0.0
    %428 = vmatprep.subr.mxu0 0.0
    %429 = vmatpush1.msra.mxu0 0.0
    %430 = vmatprep.subr.mxu0 0.0
    %431 = vmatpush1.msra.mxu0 0.0
    %432 = vmatprep.subr.mxu0 0.0
    %433 = vmatpush1.msra.mxu0 0.0
    %434 = vmatprep.subr.mxu0 0.0
    %435 = vmatpush1.msra.mxu0 0.0
    %436 = vmatprep.subr.mxu0 0.0
    %437 = vmatpush1.msra.mxu0 0.0
    %438 = vmatprep.subr.mxu0 0.0
    %439 = vmatpush1.msra.mxu0 0.0
    %440 = vmatprep.subr.mxu0 0.0
    %441 = vmatpush1.msra.mxu0 0.0
    %442 = vmatprep.mubr.f32.mxu0 0.0
    %443 = vmatmul.mubr.f32.gmra.mrb[0].mxu0 0.0
    %v444 = vpop.f32.mrb[0].mxu0
    %v445 = vadd.f32 0.0, %v444
    %v446 = vpop.f32.mrb[0].mxu0
    %v447 = vadd.f32 0.0, %v446
    %448 = vdwg.mxu0
    %449 = vmatprep.subr.mxu0 0.0
    %450 = vmatpush1.msra.mxu0 %v331
    %451 = vmatprep.subr.mxu0 0.0
    %452 = vmatpush1.msra.mxu0 %v334
    %453 = vmatprep.subr.mxu0 0.0
    %454 = vmatpush1.msra.mxu0 %v337
    %455 = vmatprep.subr.mxu0 0.0
    %456 = vmatpush1.msra.mxu0 %v340
    %457 = vmatprep.subr.mxu0 0.0
    %458 = vmatpush1.msra.mxu0 %v343
    %459 = vmatprep.subr.mxu0 0.0
    %460 = vmatpush1.msra.mxu0 %v346
    %461 = vmatprep.subr.mxu0 0.0
    %462 = vmatpush1.msra.mxu0 %v349
    %463 = vmatprep.subr.mxu0 0.0
    %464 = vmatpush1.msra.mxu0 %v352
    %465 = vmatprep.subr.mxu0 0.0
    %466 = vmatpush1.msra.mxu0 %v355
    %467 = vmatprep.subr.mxu0 0.0
    %468 = vmatpush1.msra.mxu0 %v358
    %469 = vmatprep.subr.mxu0 0.0
    %470 = vmatpush1.msra.mxu0 %v361
    %471 = vmatprep.subr.mxu0 0.0
    %472 = vmatpush1.msra.mxu0 %v364
    %473 = vmatprep.subr.mxu0 0.0
    %474 = vmatpush1.msra.mxu0 %v367
    %475 = vmatprep.subr.mxu0 0.0
    %476 = vmatpush1.msra.mxu0 %v370
    %477 = vmatprep.subr.mxu0 0.0
    %478 = vmatpush1.msra.mxu0 %v373
    %479 = vmatprep.subr.mxu0 0.0
    %480 = vmatpush1.msra.mxu0 %v376
    %481 = vmatprep.subr.mxu0 0.0
    %482 = vmatpush1.msra.mxu0 0.0
    %483 = vmatprep.subr.mxu0 0.0
    %484 = vmatpush1.msra.mxu0 0.0
    %485 = vmatprep.subr.mxu0 0.0
    %486 = vmatpush1.msra.mxu0 0.0
    %487 = vmatprep.subr.mxu0 0.0
    %488 = vmatpush1.msra.mxu0 0.0
    %489 = vmatprep.subr.mxu0 0.0
    %490 = vmatpush1.msra.mxu0 0.0
    %491 = vmatprep.subr.mxu0 0.0
    %492 = vmatpush1.msra.mxu0 0.0
    %493 = vmatprep.subr.mxu0 0.0
    %494 = vmatpush1.msra.mxu0 0.0
    %495 = vmatprep.subr.mxu0 0.0
    %496 = vmatpush1.msra.mxu0 0.0
    %497 = vmatprep.subr.mxu0 0.0
    %498 = vmatpush1.msra.mxu0 0.0
    %499 = vmatprep.subr.mxu0 0.0
    %500 = vmatpush1.msra.mxu0 0.0
    %501 = vmatprep.subr.mxu0 0.0
    %502 = vmatpush1.msra.mxu0 0.0
    %503 = vmatprep.subr.mxu0 0.0
    %504 = vmatpush1.msra.mxu0 0.0
    %505 = vmatprep.subr.mxu0 0.0
    %506 = vmatpush1.msra.mxu0 0.0
    %507 = vmatprep.subr.mxu0 0.0
    %508 = vmatpush1.msra.mxu0 0.0
    %509 = vmatprep.subr.mxu0 0.0
    %510 = vmatpush1.msra.mxu0 0.0
    %511 = vmatprep.subr.mxu0 0.0
    %512 = vmatpush1.msra.mxu0 0.0
    %513 = vmatprep.mubr.f32.mxu0 0.0
    %514 = vmatmul.mubr.f32.gmra.mrb[0].mxu0 0.0
    %v515 = vpop.f32.mrb[0].mxu0
    %v516 = vadd.f32 0.0, %v515
    %v517 = vpop.f32.mrb[0].mxu0
    %518 = vdwg.mxu0
    %v519 = vadd.f32 %v178, %v445
    %v520 = vxor.u32 %v519, 2147483648
    %v521 = vmul.f32 %v520, 1.442695
    %v522 = vpow.pop %v521
    %v523 = vadd.f32 %v522, 1.0
    %v524 = vrcp.pop %v523
    %v525 = vmul.f32 1.0, %v524
    %v526 = vadd.f32 %v180, %v447
    %v527 = vxor.u32 %v526, 2147483648
    %v528 = vmul.f32 %v527, 1.442695
    %v529 = vpow.pop %v528
    %v530 = vadd.f32 %v529, 1.0
    %v531 = vrcp.pop %v530
    %v532 = vmul.f32 1.0, %v531
    %v533 = vadd.f32 %v516, %v377
    %v534 = vmul.f32 %v525, %v533
    %v535 = vadd.f32 %v291, %v534
    %v536 = vtanh.pop %v535
    %v537 = vsub.f32 1.0, %v532
    %v538 = vmul.f32 %v537, %v536
    %v539 = vmul.f32 %v532, 0.0
    %v540 = vadd.f32 %v538, %v539
    %541 = vmatprep.subr.mxu0 %v330
    %542 = vmatpush1.msra.mxu0 %v329
    %543 = vmatprep.subr.mxu0 %v333
    %544 = vmatpush1.msra.mxu0 %v332
    %545 = vmatprep.subr.mxu0 %v336
    %546 = vmatpush1.msra.mxu0 %v335
    %547 = vmatprep.subr.mxu0 %v339
    %548 = vmatpush1.msra.mxu0 %v338
    %549 = vmatprep.subr.mxu0 %v342
    %550 = vmatpush1.msra.mxu0 %v341
    %551 = vmatprep.subr.mxu0 %v345
    %552 = vmatpush1.msra.mxu0 %v344
    %553 = vmatprep.subr.mxu0 %v348
    %554 = vmatpush1.msra.mxu0 %v347
    %555 = vmatprep.subr.mxu0 %v351
    %556 = vmatpush1.msra.mxu0 %v350
    %557 = vmatprep.subr.mxu0 %v354
    %558 = vmatpush1.msra.mxu0 %v353
    %559 = vmatprep.subr.mxu0 %v357
    %560 = vmatpush1.msra.mxu0 %v356
    %561 = vmatprep.subr.mxu0 %v360
    %562 = vmatpush1.msra.mxu0 %v359
    %563 = vmatprep.subr.mxu0 %v363
    %564 = vmatpush1.msra.mxu0 %v362
    %565 = vmatprep.subr.mxu0 %v366
    %566 = vmatpush1.msra.mxu0 %v365
    %567 = vmatprep.subr.mxu0 %v369
    %568 = vmatpush1.msra.mxu0 %v368
    %569 = vmatprep.subr.mxu0 %v372
    %570 = vmatpush1.msra.mxu0 %v371
    %571 = vmatprep.subr.mxu0 %v375
    %572 = vmatpush1.msra.mxu0 %v374
    %573 = vmatprep.subr.mxu0 0.0
    %574 = vmatpush1.msra.mxu0 0.0
    %575 = vmatprep.subr.mxu0 0.0
    %576 = vmatpush1.msra.mxu0 0.0
    %577 = vmatprep.subr.mxu0 0.0
    %578 = vmatpush1.msra.mxu0 0.0
    %579 = vmatprep.subr.mxu0 0.0
    %580 = vmatpush1.msra.mxu0 0.0
    %581 = vmatprep.subr.mxu0 0.0
    %582 = vmatpush1.msra.mxu0 0.0
    %583 = vmatprep.subr.mxu0 0.0
    %584 = vmatpush1.msra.mxu0 0.0
    %585 = vmatprep.subr.mxu0 0.0
    %586 = vmatpush1.msra.mxu0 0.0
    %587 = vmatprep.subr.mxu0 0.0
    %588 = vmatpush1.msra.mxu0 0.0
    %589 = vmatprep.subr.mxu0 0.0
    %590 = vmatpush1.msra.mxu0 0.0
    %591 = vmatprep.subr.mxu0 0.0
    %592 = vmatpush1.msra.mxu0 0.0
    %593 = vmatprep.subr.mxu0 0.0
    %594 = vmatpush1.msra.mxu0 0.0
    %595 = vmatprep.subr.mxu0 0.0
    %596 = vmatpush1.msra.mxu0 0.0
    %597 = vmatprep.subr.mxu0 0.0
    %598 = vmatpush1.msra.mxu0 0.0
    %599 = vmatprep.subr.mxu0 0.0
    %600 = vmatpush1.msra.mxu0 0.0
    %601 = vmatprep.subr.mxu0 0.0
    %602 = vmatpush1.msra.mxu0 0.0
    %603 = vmatprep.subr.mxu0 0.0
    %604 = vmatpush1.msra.mxu0 0.0
    %605 = vmatprep.mubr.f32.mxu0 0.0
    %606 = vmatmul.mubr.f32.gmra.mrb[0].mxu0 %v540
    %v607 = vpop.f32.mrb[0].mxu0
    %v608 = vadd.f32 0.0, %v607
    %v609 = vpop.f32.mrb[0].mxu0
    %v610 = vadd.f32 0.0, %v609
    %611 = vdwg.mxu0
    %612 = vmatprep.subr.mxu0 0.0
    %613 = vmatpush1.msra.mxu0 %v331
    %614 = vmatprep.subr.mxu0 0.0
    %615 = vmatpush1.msra.mxu0 %v334
    %616 = vmatprep.subr.mxu0 0.0
    %617 = vmatpush1.msra.mxu0 %v337
    %618 = vmatprep.subr.mxu0 0.0
    %619 = vmatpush1.msra.mxu0 %v340
    %620 = vmatprep.subr.mxu0 0.0
    %621 = vmatpush1.msra.mxu0 %v343
    %622 = vmatprep.subr.mxu0 0.0
    %623 = vmatpush1.msra.mxu0 %v346
    %624 = vmatprep.subr.mxu0 0.0
    %625 = vmatpush1.msra.mxu0 %v349
    %626 = vmatprep.subr.mxu0 0.0
    %627 = vmatpush1.msra.mxu0 %v352
    %628 = vmatprep.subr.mxu0 0.0
    %629 = vmatpush1.msra.mxu0 %v355
    %630 = vmatprep.subr.mxu0 0.0
    %631 = vmatpush1.msra.mxu0 %v358
    %632 = vmatprep.subr.mxu0 0.0
    %633 = vmatpush1.msra.mxu0 %v361
    %634 = vmatprep.subr.mxu0 0.0
    %635 = vmatpush1.msra.mxu0 %v364
    %636 = vmatprep.subr.mxu0 0.0
    %637 = vmatpush1.msra.mxu0 %v367
    %638 = vmatprep.subr.mxu0 0.0
    %639 = vmatpush1.msra.mxu0 %v370
    %640 = vmatprep.subr.mxu0 0.0
    %641 = vmatpush1.msra.mxu0 %v373
    %642 = vmatprep.subr.mxu0 0.0
    %643 = vmatpush1.msra.mxu0 %v376
    %644 = vmatprep.subr.mxu0 0.0
    %645 = vmatpush1.msra.mxu0 0.0
    %646 = vmatprep.subr.mxu0 0.0
    %647 = vmatpush1.msra.mxu0 0.0
    %648 = vmatprep.subr.mxu0 0.0
    %649 = vmatpush1.msra.mxu0 0.0
    %650 = vmatprep.subr.mxu0 0.0
    %651 = vmatpush1.msra.mxu0 0.0
    %652 = vmatprep.subr.mxu0 0.0
    %653 = vmatpush1.msra.mxu0 0.0
    %654 = vmatprep.subr.mxu0 0.0
    %655 = vmatpush1.msra.mxu0 0.0
    %656 = vmatprep.subr.mxu0 0.0
    %657 = vmatpush1.msra.mxu0 0.0
    %658 = vmatprep.subr.mxu0 0.0
    %659 = vmatpush1.msra.mxu0 0.0
    %660 = vmatprep.subr.mxu0 0.0
    %661 = vmatpush1.msra.mxu0 0.0
    %662 = vmatprep.subr.mxu0 0.0
    %663 = vmatpush1.msra.mxu0 0.0
    %664 = vmatprep.subr.mxu0 0.0
    %665 = vmatpush1.msra.mxu0 0.0
    %666 = vmatprep.subr.mxu0 0.0
    %667 = vmatpush1.msra.mxu0 0.0
    %668 = vmatprep.subr.mxu0 0.0
    %669 = vmatpush1.msra.mxu0 0.0
    %670 = vmatprep.subr.mxu0 0.0
    %671 = vmatpush1.msra.mxu0 0.0
    %672 = vmatprep.subr.mxu0 0.0
    %673 = vmatpush1.msra.mxu0 0.0
    %674 = vmatprep.subr.mxu0 0.0
    %675 = vmatpush1.msra.mxu0 0.0
    %676 = vmatprep.mubr.f32.mxu0 0.0
    %677 = vmatmul.mubr.f32.gmra.mrb[0].mxu0 %v540
    %v678 = vpop.f32.mrb[0].mxu0
    %v679 = vadd.f32 0.0, %v678
    %v680 = vpop.f32.mrb[0].mxu0
    %681 = vdwg.mxu0
    %v682 = vadd.f32 %v184, %v608
    %v683 = vxor.u32 %v682, 2147483648
    %v684 = vmul.f32 %v683, 1.442695
    %v685 = vpow.pop %v684
    %v686 = vadd.f32 %v685, 1.0
    %v687 = vrcp.pop %v686
    %v688 = vmul.f32 1.0, %v687
    %v689 = vadd.f32 %v186, %v610
    %v690 = vxor.u32 %v689, 2147483648
    %v691 = vmul.f32 %v690, 1.442695
    %v692 = vpow.pop %v691
    %v693 = vadd.f32 %v692, 1.0
    %v694 = vrcp.pop %v693
    %v695 = vmul.f32 1.0, %v694
    %v696 = vadd.f32 %v679, %v377
    %v697 = vmul.f32 %v688, %v696
    %v698 = vadd.f32 %v296, %v697
    %v699 = vtanh.pop %v698
    %v700 = vsub.f32 1.0, %v695
    %v701 = vmul.f32 %v700, %v699
    %v702 = vmul.f32 %v695, %v540
    %v703 = vadd.f32 %v701, %v702
    %704 = vmatprep.subr.mxu0 %v330
    %705 = vmatpush1.msra.mxu0 %v329
    %706 = vmatprep.subr.mxu0 %v333
    %707 = vmatpush1.msra.mxu0 %v332
    %708 = vmatprep.subr.mxu0 %v336
    %709 = vmatpush1.msra.mxu0 %v335
    %710 = vmatprep.subr.mxu0 %v339
    %711 = vmatpush1.msra.mxu0 %v338
    %712 = vmatprep.subr.mxu0 %v342
    %713 = vmatpush1.msra.mxu0 %v341
    %714 = vmatprep.subr.mxu0 %v345
    %715 = vmatpush1.msra.mxu0 %v344
    %716 = vmatprep.subr.mxu0 %v348
    %717 = vmatpush1.msra.mxu0 %v347
    %718 = vmatprep.subr.mxu0 %v351
    %719 = vmatpush1.msra.mxu0 %v350
    %720 = vmatprep.subr.mxu0 %v354
    %721 = vmatpush1.msra.mxu0 %v353
    %722 = vmatprep.subr.mxu0 %v357
    %723 = vmatpush1.msra.mxu0 %v356
    %724 = vmatprep.subr.mxu0 %v360
    %725 = vmatpush1.msra.mxu0 %v359
    %726 = vmatprep.subr.mxu0 %v363
    %727 = vmatpush1.msra.mxu0 %v362
    %728 = vmatprep.subr.mxu0 %v366
    %729 = vmatpush1.msra.mxu0 %v365
    %730 = vmatprep.subr.mxu0 %v369
    %731 = vmatpush1.msra.mxu0 %v368
    %732 = vmatprep.subr.mxu0 %v372
    %733 = vmatpush1.msra.mxu0 %v371
    %734 = vmatprep.subr.mxu0 %v375
    %735 = vmatpush1.msra.mxu0 %v374
    %736 = vmatprep.subr.mxu0 0.0
    %737 = vmatpush1.msra.mxu0 0.0
    %738 = vmatprep.subr.mxu0 0.0
    %739 = vmatpush1.msra.mxu0 0.0
    %740 = vmatprep.subr.mxu0 0.0
    %741 = vmatpush1.msra.mxu0 0.0
    %742 = vmatprep.subr.mxu0 0.0
    %743 = vmatpush1.msra.mxu0 0.0
    %744 = vmatprep.subr.mxu0 0.0
    %745 = vmatpush1.msra.mxu0 0.0
    %746 = vmatprep.subr.mxu0 0.0
    %747 = vmatpush1.msra.mxu0 0.0
    %748 = vmatprep.subr.mxu0 0.0
    %749 = vmatpush1.msra.mxu0 0.0
    %750 = vmatprep.subr.mxu0 0.0
    %751 = vmatpush1.msra.mxu0 0.0
    %752 = vmatprep.subr.mxu0 0.0
    %753 = vmatpush1.msra.mxu0 0.0
    %754 = vmatprep.subr.mxu0 0.0
    %755 = vmatpush1.msra.mxu0 0.0
    %756 = vmatprep.subr.mxu0 0.0
    %757 = vmatpush1.msra.mxu0 0.0
    %758 = vmatprep.subr.mxu0 0.0
    %759 = vmatpush1.msra.mxu0 0.0
    %760 = vmatprep.subr.mxu0 0.0
    %761 = vmatpush1.msra.mxu0 0.0
    %762 = vmatprep.subr.mxu0 0.0
    %763 = vmatpush1.msra.mxu0 0.0
    %764 = vmatprep.subr.mxu0 0.0
    %765 = vmatpush1.msra.mxu0 0.0
    %766 = vmatprep.subr.mxu0 0.0
    %767 = vmatpush1.msra.mxu0 0.0
    %768 = vmatprep.mubr.f32.mxu0 0.0
    %769 = vmatmul.mubr.f32.gmra.mrb[0].mxu0 %v703
    %v770 = vpop.f32.mrb[0].mxu0
    %v771 = vadd.f32 0.0, %v770
    %v772 = vpop.f32.mrb[0].mxu0
    %v773 = vadd.f32 0.0, %v772
    %774 = vdwg.mxu0
    %775 = vmatprep.subr.mxu0 0.0
    %776 = vmatpush1.msra.mxu0 %v331
    %777 = vmatprep.subr.mxu0 0.0
    %778 = vmatpush1.msra.mxu0 %v334
    %779 = vmatprep.subr.mxu0 0.0
    %780 = vmatpush1.msra.mxu0 %v337
    %781 = vmatprep.subr.mxu0 0.0
    %782 = vmatpush1.msra.mxu0 %v340
    %783 = vmatprep.subr.mxu0 0.0
    %784 = vmatpush1.msra.mxu0 %v343
    %785 = vmatprep.subr.mxu0 0.0
    %786 = vmatpush1.msra.mxu0 %v346
    %787 = vmatprep.subr.mxu0 0.0
    %788 = vmatpush1.msra.mxu0 %v349
    %789 = vmatprep.subr.mxu0 0.0
    %790 = vmatpush1.msra.mxu0 %v352
    %791 = vmatprep.subr.mxu0 0.0
    %792 = vmatpush1.msra.mxu0 %v355
    %793 = vmatprep.subr.mxu0 0.0
    %794 = vmatpush1.msra.mxu0 %v358
    %795 = vmatprep.subr.mxu0 0.0
    %796 = vmatpush1.msra.mxu0 %v361
    %797 = vmatprep.subr.mxu0 0.0
    %798 = vmatpush1.msra.mxu0 %v364
    %799 = vmatprep.subr.mxu0 0.0
    %800 = vmatpush1.msra.mxu0 %v367
    %801 = vmatprep.subr.mxu0 0.0
    %802 = vmatpush1.msra.mxu0 %v370
    %803 = vmatprep.subr.mxu0 0.0
    %804 = vmatpush1.msra.mxu0 %v373
    %805 = vmatprep.subr.mxu0 0.0
    %806 = vmatpush1.msra.mxu0 %v376
    %807 = vmatprep.subr.mxu0 0.0
    %808 = vmatpush1.msra.mxu0 0.0
    %809 = vmatprep.subr.mxu0 0.0
    %810 = vmatpush1.msra.mxu0 0.0
    %811 = vmatprep.subr.mxu0 0.0
    %812 = vmatpush1.msra.mxu0 0.0
    %813 = vmatprep.subr.mxu0 0.0
    %814 = vmatpush1.msra.mxu0 0.0
    %815 = vmatprep.subr.mxu0 0.0
    %816 = vmatpush1.msra.mxu0 0.0
    %817 = vmatprep.subr.mxu0 0.0
    %818 = vmatpush1.msra.mxu0 0.0
    %819 = vmatprep.subr.mxu0 0.0
    %820 = vmatpush1.msra.mxu0 0.0
    %821 = vmatprep.subr.mxu0 0.0
    %822 = vmatpush1.msra.mxu0 0.0
    %823 = vmatprep.subr.mxu0 0.0
    %824 = vmatpush1.msra.mxu0 0.0
    %825 = vmatprep.subr.mxu0 0.0
    %826 = vmatpush1.msra.mxu0 0.0
    %827 = vmatprep.subr.mxu0 0.0
    %828 = vmatpush1.msra.mxu0 0.0
    %829 = vmatprep.subr.mxu0 0.0
    %830 = vmatpush1.msra.mxu0 0.0
    %831 = vmatprep.subr.mxu0 0.0
    %832 = vmatpush1.msra.mxu0 0.0
    %833 = vmatprep.subr.mxu0 0.0
    %834 = vmatpush1.msra.mxu0 0.0
    %835 = vmatprep.subr.mxu0 0.0
    %836 = vmatpush1.msra.mxu0 0.0
    %837 = vmatprep.subr.mxu0 0.0
    %838 = vmatpush1.msra.mxu0 0.0
    %839 = vmatprep.mubr.f32.mxu0 0.0
    %840 = vmatmul.mubr.f32.gmra.mrb[0].mxu0 %v703
    %v841 = vpop.f32.mrb[0].mxu0
    %v842 = vadd.f32 0.0, %v841
    %v843 = vpop.f32.mrb[0].mxu0
    %844 = vdwg.mxu0
    %v845 = vadd.f32 %v190, %v771
    %v846 = vxor.u32 %v845, 2147483648
    %v847 = vmul.f32 %v846, 1.442695
    %v848 = vpow.pop %v847
    %v849 = vadd.f32 %v848, 1.0
    %v850 = vrcp.pop %v849
    %v851 = vmul.f32 1.0, %v850
    %v852 = vadd.f32 %v192, %v773
    %v853 = vxor.u32 %v852, 2147483648
    %v854 = vmul.f32 %v853, 1.442695
    %v855 = vpow.pop %v854
    %v856 = vadd.f32 %v855, 1.0
    %v857 = vrcp.pop %v856
    %v858 = vmul.f32 1.0, %v857
    %v859 = vadd.f32 %v842, %v377
    %v860 = vmul.f32 %v851, %v859
    %v861 = vadd.f32 %v301, %v860
    %v862 = vtanh.pop %v861
    %v863 = vsub.f32 1.0, %v858
    %v864 = vmul.f32 %v863, %v862
    %v865 = vmul.f32 %v858, %v703
    %v866 = vadd.f32 %v864, %v865
    %867 = vmatprep.subr.mxu0 %v330
    %868 = vmatpush1.msra.mxu0 %v329
    %869 = vmatprep.subr.mxu0 %v333
    %870 = vmatpush1.msra.mxu0 %v332
    %871 = vmatprep.subr.mxu0 %v336
    %872 = vmatpush1.msra.mxu0 %v335
    %873 = vmatprep.subr.mxu0 %v339
    %874 = vmatpush1.msra.mxu0 %v338
    %875 = vmatprep.subr.mxu0 %v342
    %876 = vmatpush1.msra.mxu0 %v341
    %877 = vmatprep.subr.mxu0 %v345
    %878 = vmatpush1.msra.mxu0 %v344
    %879 = vmatprep.subr.mxu0 %v348
    %880 = vmatpush1.msra.mxu0 %v347
    %881 = vmatprep.subr.mxu0 %v351
    %882 = vmatpush1.msra.mxu0 %v350
    %883 = vmatprep.subr.mxu0 %v354
    %884 = vmatpush1.msra.mxu0 %v353
    %885 = vmatprep.subr.mxu0 %v357
    %886 = vmatpush1.msra.mxu0 %v356
    %887 = vmatprep.subr.mxu0 %v360
    %888 = vmatpush1.msra.mxu0 %v359
    %889 = vmatprep.subr.mxu0 %v363
    %890 = vmatpush1.msra.mxu0 %v362
    %891 = vmatprep.subr.mxu0 %v366
    %892 = vmatpush1.msra.mxu0 %v365
    %893 = vmatprep.subr.mxu0 %v369
    %894 = vmatpush1.msra.mxu0 %v368
    %895 = vmatprep.subr.mxu0 %v372
    %896 = vmatpush1.msra.mxu0 %v371
    %897 = vmatprep.subr.mxu0 %v375
    %898 = vmatpush1.msra.mxu0 %v374
    %899 = vmatprep.subr.mxu0 0.0
    %900 = vmatpush1.msra.mxu0 0.0
    %901 = vmatprep.subr.mxu0 0.0
    %902 = vmatpush1.msra.mxu0 0.0
    %903 = vmatprep.subr.mxu0 0.0
    %904 = vmatpush1.msra.mxu0 0.0
    %905 = vmatprep.subr.mxu0 0.0
    %906 = vmatpush1.msra.mxu0 0.0
    %907 = vmatprep.subr.mxu0 0.0
    %908 = vmatpush1.msra.mxu0 0.0
    %909 = vmatprep.subr.mxu0 0.0
    %910 = vmatpush1.msra.mxu0 0.0
    %911 = vmatprep.subr.mxu0 0.0
    %912 = vmatpush1.msra.mxu0 0.0
    %913 = vmatprep.subr.mxu0 0.0
    %914 = vmatpush1.msra.mxu0 0.0
    %915 = vmatprep.subr.mxu0 0.0
    %916 = vmatpush1.msra.mxu0 0.0
    %917 = vmatprep.subr.mxu0 0.0
    %918 = vmatpush1.msra.mxu0 0.0
    %919 = vmatprep.subr.mxu0 0.0
    %920 = vmatpush1.msra.mxu0 0.0
    %921 = vmatprep.subr.mxu0 0.0
    %922 = vmatpush1.msra.mxu0 0.0
    %923 = vmatprep.subr.mxu0 0.0
    %924 = vmatpush1.msra.mxu0 0.0
    %925 = vmatprep.subr.mxu0 0.0
    %926 = vmatpush1.msra.mxu0 0.0
    %927 = vmatprep.subr.mxu0 0.0
    %928 = vmatpush1.msra.mxu0 0.0
    %929 = vmatprep.subr.mxu0 0.0
    %930 = vmatpush1.msra.mxu0 0.0
    %931 = vmatprep.mubr.f32.mxu0 0.0
    %932 = vmatmul.mubr.f32.gmra.mrb[0].mxu0 %v866
    %v933 = vpop.f32.mrb[0].mxu0
    %v934 = vadd.f32 0.0, %v933
    %v935 = vpop.f32.mrb[0].mxu0
    %v936 = vadd.f32 0.0, %v935
    %937 = vdwg.mxu0
    %938 = vmatprep.subr.mxu0 0.0
    %939 = vmatpush1.msra.mxu0 %v331
    %940 = vmatprep.subr.mxu0 0.0
    %941 = vmatpush1.msra.mxu0 %v334
    %942 = vmatprep.subr.mxu0 0.0
    %943 = vmatpush1.msra.mxu0 %v337
    %944 = vmatprep.subr.mxu0 0.0
    %945 = vmatpush1.msra.mxu0 %v340
    %946 = vmatprep.subr.mxu0 0.0
    %947 = vmatpush1.msra.mxu0 %v343
    %948 = vmatprep.subr.mxu0 0.0
    %949 = vmatpush1.msra.mxu0 %v346
    %950 = vmatprep.subr.mxu0 0.0
    %951 = vmatpush1.msra.mxu0 %v349
    %952 = vmatprep.subr.mxu0 0.0
    %953 = vmatpush1.msra.mxu0 %v352
    %954 = vmatprep.subr.mxu0 0.0
    %955 = vmatpush1.msra.mxu0 %v355
    %956 = vmatprep.subr.mxu0 0.0
    %957 = vmatpush1.msra.mxu0 %v358
    %958 = vmatprep.subr.mxu0 0.0
    %959 = vmatpush1.msra.mxu0 %v361
    %960 = vmatprep.subr.mxu0 0.0
    %961 = vmatpush1.msra.mxu0 %v364
    %962 = vmatprep.subr.mxu0 0.0
    %963 = vmatpush1.msra.mxu0 %v367
    %964 = vmatprep.subr.mxu0 0.0
    %965 = vmatpush1.msra.mxu0 %v370
    %966 = vmatprep.subr.mxu0 0.0
    %967 = vmatpush1.msra.mxu0 %v373
    %968 = vmatprep.subr.mxu0 0.0
    %969 = vmatpush1.msra.mxu0 %v376
    %970 = vmatprep.subr.mxu0 0.0
    %971 = vmatpush1.msra.mxu0 0.0
    %972 = vmatprep.subr.mxu0 0.0
    %973 = vmatpush1.msra.mxu0 0.0
    %974 = vmatprep.subr.mxu0 0.0
    %975 = vmatpush1.msra.mxu0 0.0
    %976 = vmatprep.subr.mxu0 0.0
    %977 = vmatpush1.msra.mxu0 0.0
    %978 = vmatprep.subr.mxu0 0.0
    %979 = vmatpush1.msra.mxu0 0.0
    %980 = vmatprep.subr.mxu0 0.0
    %981 = vmatpush1.msra.mxu0 0.0
    %982 = vmatprep.subr.mxu0 0.0
    %983 = vmatpush1.msra.mxu0 0.0
    %984 = vmatprep.subr.mxu0 0.0
    %985 = vmatpush1.msra.mxu0 0.0
    %986 = vmatprep.subr.mxu0 0.0
    %987 = vmatpush1.msra.mxu0 0.0
    %988 = vmatprep.subr.mxu0 0.0
    %989 = vmatpush1.msra.mxu0 0.0
    %990 = vmatprep.subr.mxu0 0.0
    %991 = vmatpush1.msra.mxu0 0.0
    %992 = vmatprep.subr.mxu0 0.0
    %993 = vmatpush1.msra.mxu0 0.0
    %994 = vmatprep.subr.mxu0 0.0
    %995 = vmatpush1.msra.mxu0 0.0
    %996 = vmatprep.subr.mxu0 0.0
    %997 = vmatpush1.msra.mxu0 0.0
    %998 = vmatprep.subr.mxu0 0.0
    %999 = vmatpush1.msra.mxu0 0.0
    %1000 = vmatprep.subr.mxu0 0.0
    %1001 = vmatpush1.msra.mxu0 0.0
    %1002 = vmatprep.mubr.f32.mxu0 0.0
    %1003 = vmatmul.mubr.f32.gmra.mrb[0].mxu0 %v866
    %v1004 = vpop.f32.mrb[0].mxu0
    %v1005 = vadd.f32 0.0, %v1004
    %v1006 = vpop.f32.mrb[0].mxu0
    %1007 = vdwg.mxu0
    %v1008 = vadd.f32 %v196, %v934
    %v1009 = vxor.u32 %v1008, 2147483648
    %v1010 = vmul.f32 %v1009, 1.442695
    %v1011 = vpow.pop %v1010
    %v1012 = vadd.f32 %v1011, 1.0
    %v1013 = vrcp.pop %v1012
    %v1014 = vmul.f32 1.0, %v1013
    %v1015 = vadd.f32 %v198, %v936
    %v1016 = vxor.u32 %v1015, 2147483648
    %v1017 = vmul.f32 %v1016, 1.442695
    %v1018 = vpow.pop %v1017
    %v1019 = vadd.f32 %v1018, 1.0
    %v1020 = vrcp.pop %v1019
    %v1021 = vmul.f32 1.0, %v1020
    %v1022 = vadd.f32 %v1005, %v377
    %v1023 = vmul.f32 %v1014, %v1022
    %v1024 = vadd.f32 %v306, %v1023
    %v1025 = vtanh.pop %v1024
    %v1026 = vsub.f32 1.0, %v1021
    %v1027 = vmul.f32 %v1026, %v1025
    %v1028 = vmul.f32 %v1021, %v866
    %v1029 = vadd.f32 %v1027, %v1028
    %1030 = vmatprep.subr.mxu0 %v330
    %1031 = vmatpush1.msra.mxu0 %v329
    %1032 = vmatprep.subr.mxu0 %v333
    %1033 = vmatpush1.msra.mxu0 %v332
    %1034 = vmatprep.subr.mxu0 %v336
    %1035 = vmatpush1.msra.mxu0 %v335
    %1036 = vmatprep.subr.mxu0 %v339
    %1037 = vmatpush1.msra.mxu0 %v338
    %1038 = vmatprep.subr.mxu0 %v342
    %1039 = vmatpush1.msra.mxu0 %v341
    %1040 = vmatprep.subr.mxu0 %v345
    %1041 = vmatpush1.msra.mxu0 %v344
    %1042 = vmatprep.subr.mxu0 %v348
    %1043 = vmatpush1.msra.mxu0 %v347
    %1044 = vmatprep.subr.mxu0 %v351
    %1045 = vmatpush1.msra.mxu0 %v350
    %1046 = vmatprep.subr.mxu0 %v354
    %1047 = vmatpush1.msra.mxu0 %v353
    %1048 = vmatprep.subr.mxu0 %v357
    %1049 = vmatpush1.msra.mxu0 %v356
    %1050 = vmatprep.subr.mxu0 %v360
    %1051 = vmatpush1.msra.mxu0 %v359
    %1052 = vmatprep.subr.mxu0 %v363
    %1053 = vmatpush1.msra.mxu0 %v362
    %1054 = vmatprep.subr.mxu0 %v366
    %1055 = vmatpush1.msra.mxu0 %v365
    %1056 = vmatprep.subr.mxu0 %v369
    %1057 = vmatpush1.msra.mxu0 %v368
    %1058 = vmatprep.subr.mxu0 %v372
    %1059 = vmatpush1.msra.mxu0 %v371
    %1060 = vmatprep.subr.mxu0 %v375
    %1061 = vmatpush1.msra.mxu0 %v374
    %1062 = vmatprep.subr.mxu0 0.0
    %1063 = vmatpush1.msra.mxu0 0.0
    %1064 = vmatprep.subr.mxu0 0.0
    %1065 = vmatpush1.msra.mxu0 0.0
    %1066 = vmatprep.subr.mxu0 0.0
    %1067 = vmatpush1.msra.mxu0 0.0
    %1068 = vmatprep.subr.mxu0 0.0
    %1069 = vmatpush1.msra.mxu0 0.0
    %1070 = vmatprep.subr.mxu0 0.0
    %1071 = vmatpush1.msra.mxu0 0.0
    %1072 = vmatprep.subr.mxu0 0.0
    %1073 = vmatpush1.msra.mxu0 0.0
    %1074 = vmatprep.subr.mxu0 0.0
    %1075 = vmatpush1.msra.mxu0 0.0
    %1076 = vmatprep.subr.mxu0 0.0
    %1077 = vmatpush1.msra.mxu0 0.0
    %1078 = vmatprep.subr.mxu0 0.0
    %1079 = vmatpush1.msra.mxu0 0.0
    %1080 = vmatprep.subr.mxu0 0.0
    %1081 = vmatpush1.msra.mxu0 0.0
    %1082 = vmatprep.subr.mxu0 0.0
    %1083 = vmatpush1.msra.mxu0 0.0
    %1084 = vmatprep.subr.mxu0 0.0
    %1085 = vmatpush1.msra.mxu0 0.0
    %1086 = vmatprep.subr.mxu0 0.0
    %1087 = vmatpush1.msra.mxu0 0.0
    %1088 = vmatprep.subr.mxu0 0.0
    %1089 = vmatpush1.msra.mxu0 0.0
    %1090 = vmatprep.subr.mxu0 0.0
    %1091 = vmatpush1.msra.mxu0 0.0
    %1092 = vmatprep.subr.mxu0 0.0
    %1093 = vmatpush1.msra.mxu0 0.0
    %1094 = vmatprep.mubr.f32.mxu0 0.0
    %1095 = vmatmul.mubr.f32.gmra.mrb[0].mxu0 %v1029
    %v1096 = vpop.f32.mrb[0].mxu0
    %v1097 = vadd.f32 0.0, %v1096
    %v1098 = vpop.f32.mrb[0].mxu0
    %v1099 = vadd.f32 0.0, %v1098
    %1100 = vdwg.mxu0
    %1101 = vmatprep.subr.mxu0 0.0
    %1102 = vmatpush1.msra.mxu0 %v331
    %1103 = vmatprep.subr.mxu0 0.0
    %1104 = vmatpush1.msra.mxu0 %v334
    %1105 = vmatprep.subr.mxu0 0.0
    %1106 = vmatpush1.msra.mxu0 %v337
    %1107 = vmatprep.subr.mxu0 0.0
    %1108 = vmatpush1.msra.mxu0 %v340
    %1109 = vmatprep.subr.mxu0 0.0
    %1110 = vmatpush1.msra.mxu0 %v343
    %1111 = vmatprep.subr.mxu0 0.0
    %1112 = vmatpush1.msra.mxu0 %v346
    %1113 = vmatprep.subr.mxu0 0.0
    %1114 = vmatpush1.msra.mxu0 %v349
    %1115 = vmatprep.subr.mxu0 0.0
    %1116 = vmatpush1.msra.mxu0 %v352
    %1117 = vmatprep.subr.mxu0 0.0
    %1118 = vmatpush1.msra.mxu0 %v355
    %1119 = vmatprep.subr.mxu0 0.0
    %1120 = vmatpush1.msra.mxu0 %v358
    %1121 = vmatprep.subr.mxu0 0.0
    %1122 = vmatpush1.msra.mxu0 %v361
    %1123 = vmatprep.subr.mxu0 0.0
    %1124 = vmatpush1.msra.mxu0 %v364
    %1125 = vmatprep.subr.mxu0 0.0
    %1126 = vmatpush1.msra.mxu0 %v367
    %1127 = vmatprep.subr.mxu0 0.0
    %1128 = vmatpush1.msra.mxu0 %v370
    %1129 = vmatprep.subr.mxu0 0.0
    %1130 = vmatpush1.msra.mxu0 %v373
    %1131 = vmatprep.subr.mxu0 0.0
    %1132 = vmatpush1.msra.mxu0 %v376
    %1133 = vmatprep.subr.mxu0 0.0
    %1134 = vmatpush1.msra.mxu0 0.0
    %1135 = vmatprep.subr.mxu0 0.0
    %1136 = vmatpush1.msra.mxu0 0.0
    %1137 = vmatprep.subr.mxu0 0.0
    %1138 = vmatpush1.msra.mxu0 0.0
    %1139 = vmatprep.subr.mxu0 0.0
    %1140 = vmatpush1.msra.mxu0 0.0
    %1141 = vmatprep.subr.mxu0 0.0
    %1142 = vmatpush1.msra.mxu0 0.0
    %1143 = vmatprep.subr.mxu0 0.0
    %1144 = vmatpush1.msra.mxu0 0.0
    %1145 = vmatprep.subr.mxu0 0.0
    %1146 = vmatpush1.msra.mxu0 0.0
    %1147 = vmatprep.subr.mxu0 0.0
    %1148 = vmatpush1.msra.mxu0 0.0
    %1149 = vmatprep.subr.mxu0 0.0
    %1150 = vmatpush1.msra.mxu0 0.0
    %1151 = vmatprep.subr.mxu0 0.0
    %1152 = vmatpush1.msra.mxu0 0.0
    %1153 = vmatprep.subr.mxu0 0.0
    %1154 = vmatpush1.msra.mxu0 0.0
    %1155 = vmatprep.subr.mxu0 0.0
    %1156 = vmatpush1.msra.mxu0 0.0
    %1157 = vmatprep.subr.mxu0 0.0
    %1158 = vmatpush1.msra.mxu0 0.0
    %1159 = vmatprep.subr.mxu0 0.0
    %1160 = vmatpush1.msra.mxu0 0.0
    %1161 = vmatprep.subr.mxu0 0.0
    %1162 = vmatpush1.msra.mxu0 0.0
    %1163 = vmatprep.subr.mxu0 0.0
    %1164 = vmatpush1.msra.mxu0 0.0
    %1165 = vmatprep.mubr.f32.mxu0 0.0
    %1166 = vmatmul.mubr.f32.gmra.mrb[0].mxu0 %v1029
    %v1167 = vpop.f32.mrb[0].mxu0
    %v1168 = vadd.f32 0.0, %v1167
    %v1169 = vpop.f32.mrb[0].mxu0
    %1170 = vdwg.mxu0
    %v1171 = vadd.f32 %v202, %v1097
    %v1172 = vxor.u32 %v1171, 2147483648
    %v1173 = vmul.f32 %v1172, 1.442695
    %v1174 = vpow.pop %v1173
    %v1175 = vadd.f32 %v1174, 1.0
    %v1176 = vrcp.pop %v1175
    %v1177 = vmul.f32 1.0, %v1176
    %v1178 = vadd.f32 %v204, %v1099
    %v1179 = vxor.u32 %v1178, 2147483648
    %v1180 = vmul.f32 %v1179, 1.442695
    %v1181 = vpow.pop %v1180
    %v1182 = vadd.f32 %v1181, 1.0
    %v1183 = vrcp.pop %v1182
    %v1184 = vmul.f32 1.0, %v1183
    %v1185 = vadd.f32 %v1168, %v377
    %v1186 = vmul.f32 %v1177, %v1185
    %v1187 = vadd.f32 %v311, %v1186
    %v1188 = vtanh.pop %v1187
    %v1189 = vsub.f32 1.0, %v1184
    %v1190 = vmul.f32 %v1189, %v1188
    %v1191 = vmul.f32 %v1184, %v1029
    %v1192 = vadd.f32 %v1190, %v1191
    %1193 = vmatprep.subr.mxu0 %v330
    %1194 = vmatpush1.msra.mxu0 %v329
    %1195 = vmatprep.subr.mxu0 %v333
    %1196 = vmatpush1.msra.mxu0 %v332
    %1197 = vmatprep.subr.mxu0 %v336
    %1198 = vmatpush1.msra.mxu0 %v335
    %1199 = vmatprep.subr.mxu0 %v339
    %1200 = vmatpush1.msra.mxu0 %v338
    %1201 = vmatprep.subr.mxu0 %v342
    %1202 = vmatpush1.msra.mxu0 %v341
    %1203 = vmatprep.subr.mxu0 %v345
    %1204 = vmatpush1.msra.mxu0 %v344
    %1205 = vmatprep.subr.mxu0 %v348
    %1206 = vmatpush1.msra.mxu0 %v347
    %1207 = vmatprep.subr.mxu0 %v351
    %1208 = vmatpush1.msra.mxu0 %v350
    %1209 = vmatprep.subr.mxu0 %v354
    %1210 = vmatpush1.msra.mxu0 %v353
    %1211 = vmatprep.subr.mxu0 %v357
    %1212 = vmatpush1.msra.mxu0 %v356
    %1213 = vmatprep.subr.mxu0 %v360
    %1214 = vmatpush1.msra.mxu0 %v359
    %1215 = vmatprep.subr.mxu0 %v363
    %1216 = vmatpush1.msra.mxu0 %v362
    %1217 = vmatprep.subr.mxu0 %v366
    %1218 = vmatpush1.msra.mxu0 %v365
    %1219 = vmatprep.subr.mxu0 %v369
    %1220 = vmatpush1.msra.mxu0 %v368
    %1221 = vmatprep.subr.mxu0 %v372
    %1222 = vmatpush1.msra.mxu0 %v371
    %1223 = vmatprep.subr.mxu0 %v375
    %1224 = vmatpush1.msra.mxu0 %v374
    %1225 = vmatprep.subr.mxu0 0.0
    %1226 = vmatpush1.msra.mxu0 0.0
    %1227 = vmatprep.subr.mxu0 0.0
    %1228 = vmatpush1.msra.mxu0 0.0
    %1229 = vmatprep.subr.mxu0 0.0
    %1230 = vmatpush1.msra.mxu0 0.0
    %1231 = vmatprep.subr.mxu0 0.0
    %1232 = vmatpush1.msra.mxu0 0.0
    %1233 = vmatprep.subr.mxu0 0.0
    %1234 = vmatpush1.msra.mxu0 0.0
    %1235 = vmatprep.subr.mxu0 0.0
    %1236 = vmatpush1.msra.mxu0 0.0
    %1237 = vmatprep.subr.mxu0 0.0
    %1238 = vmatpush1.msra.mxu0 0.0
    %1239 = vmatprep.subr.mxu0 0.0
    %1240 = vmatpush1.msra.mxu0 0.0
    %1241 = vmatprep.subr.mxu0 0.0
    %1242 = vmatpush1.msra.mxu0 0.0
    %1243 = vmatprep.subr.mxu0 0.0
    %1244 = vmatpush1.msra.mxu0 0.0
    %1245 = vmatprep.subr.mxu0 0.0
    %1246 = vmatpush1.msra.mxu0 0.0
    %1247 = vmatprep.subr.mxu0 0.0
    %1248 = vmatpush1.msra.mxu0 0.0
    %1249 = vmatprep.subr.mxu0 0.0
    %1250 = vmatpush1.msra.mxu0 0.0
    %1251 = vmatprep.subr.mxu0 0.0
    %1252 = vmatpush1.msra.mxu0 0.0
    %1253 = vmatprep.subr.mxu0 0.0
    %1254 = vmatpush1.msra.mxu0 0.0
    %1255 = vmatprep.subr.mxu0 0.0
    %1256 = vmatpush1.msra.mxu0 0.0
    %1257 = vmatprep.mubr.f32.mxu0 0.0
    %1258 = vmatmul.mubr.f32.gmra.mrb[0].mxu0 %v1192
    %v1259 = vpop.f32.mrb[0].mxu0
    %v1260 = vadd.f32 0.0, %v1259
    %v1261 = vpop.f32.mrb[0].mxu0
    %v1262 = vadd.f32 0.0, %v1261
    %1263 = vdwg.mxu0
    %1264 = vmatprep.subr.mxu0 0.0
    %1265 = vmatpush1.msra.mxu0 %v331
    %1266 = vmatprep.subr.mxu0 0.0
    %1267 = vmatpush1.msra.mxu0 %v334
    %1268 = vmatprep.subr.mxu0 0.0
    %1269 = vmatpush1.msra.mxu0 %v337
    %1270 = vmatprep.subr.mxu0 0.0
    %1271 = vmatpush1.msra.mxu0 %v340
    %1272 = vmatprep.subr.mxu0 0.0
    %1273 = vmatpush1.msra.mxu0 %v343
    %1274 = vmatprep.subr.mxu0 0.0
    %1275 = vmatpush1.msra.mxu0 %v346
    %1276 = vmatprep.subr.mxu0 0.0
    %1277 = vmatpush1.msra.mxu0 %v349
    %1278 = vmatprep.subr.mxu0 0.0
    %1279 = vmatpush1.msra.mxu0 %v352
    %1280 = vmatprep.subr.mxu0 0.0
    %1281 = vmatpush1.msra.mxu0 %v355
    %1282 = vmatprep.subr.mxu0 0.0
    %1283 = vmatpush1.msra.mxu0 %v358
    %1284 = vmatprep.subr.mxu0 0.0
    %1285 = vmatpush1.msra.mxu0 %v361
    %1286 = vmatprep.subr.mxu0 0.0
    %1287 = vmatpush1.msra.mxu0 %v364
    %1288 = vmatprep.subr.mxu0 0.0
    %1289 = vmatpush1.msra.mxu0 %v367
    %1290 = vmatprep.subr.mxu0 0.0
    %1291 = vmatpush1.msra.mxu0 %v370
    %1292 = vmatprep.subr.mxu0 0.0
    %1293 = vmatpush1.msra.mxu0 %v373
    %1294 = vmatprep.subr.mxu0 0.0
    %1295 = vmatpush1.msra.mxu0 %v376
    %1296 = vmatprep.subr.mxu0 0.0
    %1297 = vmatpush1.msra.mxu0 0.0
    %1298 = vmatprep.subr.mxu0 0.0
    %1299 = vmatpush1.msra.mxu0 0.0
    %1300 = vmatprep.subr.mxu0 0.0
    %1301 = vmatpush1.msra.mxu0 0.0
    %1302 = vmatprep.subr.mxu0 0.0
    %1303 = vmatpush1.msra.mxu0 0.0
    %1304 = vmatprep.subr.mxu0 0.0
    %1305 = vmatpush1.msra.mxu0 0.0
    %1306 = vmatprep.subr.mxu0 0.0
    %1307 = vmatpush1.msra.mxu0 0.0
    %1308 = vmatprep.subr.mxu0 0.0
    %1309 = vmatpush1.msra.mxu0 0.0
    %1310 = vmatprep.subr.mxu0 0.0
    %1311 = vmatpush1.msra.mxu0 0.0
    %1312 = vmatprep.subr.mxu0 0.0
    %1313 = vmatpush1.msra.mxu0 0.0
    %1314 = vmatprep.subr.mxu0 0.0
    %1315 = vmatpush1.msra.mxu0 0.0
    %1316 = vmatprep.subr.mxu0 0.0
    %1317 = vmatpush1.msra.mxu0 0.0
    %1318 = vmatprep.subr.mxu0 0.0
    %1319 = vmatpush1.msra.mxu0 0.0
    %1320 = vmatprep.subr.mxu0 0.0
    %1321 = vmatpush1.msra.mxu0 0.0
    %1322 = vmatprep.subr.mxu0 0.0
    %1323 = vmatpush1.msra.mxu0 0.0
    %1324 = vmatprep.subr.mxu0 0.0
    %1325 = vmatpush1.msra.mxu0 0.0
    %1326 = vmatprep.subr.mxu0 0.0
    %1327 = vmatpush1.msra.mxu0 0.0
    %1328 = vmatprep.mubr.f32.mxu0 0.0
    %1329 = vmatmul.mubr.f32.gmra.mrb[0].mxu0 %v1192
    %v1330 = vpop.f32.mrb[0].mxu0
    %v1331 = vadd.f32 0.0, %v1330
    %v1332 = vpop.f32.mrb[0].mxu0
    %1333 = vdwg.mxu0
    %v1334 = vadd.f32 %v208, %v1260
    %v1335 = vxor.u32 %v1334, 2147483648
    %v1336 = vmul.f32 %v1335, 1.442695
    %v1337 = vpow.pop %v1336
    %v1338 = vadd.f32 %v1337, 1.0
    %v1339 = vrcp.pop %v1338
    %v1340 = vmul.f32 1.0, %v1339
    %v1341 = vadd.f32 %v210, %v1262
    %v1342 = vxor.u32 %v1341, 2147483648
    %v1343 = vmul.f32 %v1342, 1.442695
    %v1344 = vpow.pop %v1343
    %v1345 = vadd.f32 %v1344, 1.0
    %v1346 = vrcp.pop %v1345
    %v1347 = vmul.f32 1.0, %v1346
    %v1348 = vadd.f32 %v1331, %v377
    %v1349 = vmul.f32 %v1340, %v1348
    %v1350 = vadd.f32 %v316, %v1349
    %v1351 = vtanh.pop %v1350
    %v1352 = vsub.f32 1.0, %v1347
    %v1353 = vmul.f32 %v1352, %v1351
    %v1354 = vmul.f32 %v1347, %v1192
    %v1355 = vadd.f32 %v1353, %v1354
    %1356 = vmatprep.subr.mxu0 %v330
    %1357 = vmatpush1.msra.mxu0 %v329
    %1358 = vmatprep.subr.mxu0 %v333
    %1359 = vmatpush1.msra.mxu0 %v332
    %1360 = vmatprep.subr.mxu0 %v336
    %1361 = vmatpush1.msra.mxu0 %v335
    %1362 = vmatprep.subr.mxu0 %v339
    %1363 = vmatpush1.msra.mxu0 %v338
    %1364 = vmatprep.subr.mxu0 %v342
    %1365 = vmatpush1.msra.mxu0 %v341
    %1366 = vmatprep.subr.mxu0 %v345
    %1367 = vmatpush1.msra.mxu0 %v344
    %1368 = vmatprep.subr.mxu0 %v348
    %1369 = vmatpush1.msra.mxu0 %v347
    %1370 = vmatprep.subr.mxu0 %v351
    %1371 = vmatpush1.msra.mxu0 %v350
    %1372 = vmatprep.subr.mxu0 %v354
    %1373 = vmatpush1.msra.mxu0 %v353
    %1374 = vmatprep.subr.mxu0 %v357
    %1375 = vmatpush1.msra.mxu0 %v356
    %1376 = vmatprep.subr.mxu0 %v360
    %1377 = vmatpush1.msra.mxu0 %v359
    %1378 = vmatprep.subr.mxu0 %v363
    %1379 = vmatpush1.msra.mxu0 %v362
    %1380 = vmatprep.subr.mxu0 %v366
    %1381 = vmatpush1.msra.mxu0 %v365
    %1382 = vmatprep.subr.mxu0 %v369
    %1383 = vmatpush1.msra.mxu0 %v368
    %1384 = vmatprep.subr.mxu0 %v372
    %1385 = vmatpush1.msra.mxu0 %v371
    %1386 = vmatprep.subr.mxu0 %v375
    %1387 = vmatpush1.msra.mxu0 %v374
    %1388 = vmatprep.subr.mxu0 0.0
    %1389 = vmatpush1.msra.mxu0 0.0
    %1390 = vmatprep.subr.mxu0 0.0
    %1391 = vmatpush1.msra.mxu0 0.0
    %1392 = vmatprep.subr.mxu0 0.0
    %1393 = vmatpush1.msra.mxu0 0.0
    %1394 = vmatprep.subr.mxu0 0.0
    %1395 = vmatpush1.msra.mxu0 0.0
    %1396 = vmatprep.subr.mxu0 0.0
    %1397 = vmatpush1.msra.mxu0 0.0
    %1398 = vmatprep.subr.mxu0 0.0
    %1399 = vmatpush1.msra.mxu0 0.0
    %1400 = vmatprep.subr.mxu0 0.0
    %1401 = vmatpush1.msra.mxu0 0.0
    %1402 = vmatprep.subr.mxu0 0.0
    %1403 = vmatpush1.msra.mxu0 0.0
    %1404 = vmatprep.subr.mxu0 0.0
    %1405 = vmatpush1.msra.mxu0 0.0
    %1406 = vmatprep.subr.mxu0 0.0
    %1407 = vmatpush1.msra.mxu0 0.0
    %1408 = vmatprep.subr.mxu0 0.0
    %1409 = vmatpush1.msra.mxu0 0.0
    %1410 = vmatprep.subr.mxu0 0.0
    %1411 = vmatpush1.msra.mxu0 0.0
    %1412 = vmatprep.subr.mxu0 0.0
    %1413 = vmatpush1.msra.mxu0 0.0
    %1414 = vmatprep.subr.mxu0 0.0
    %1415 = vmatpush1.msra.mxu0 0.0
    %1416 = vmatprep.subr.mxu0 0.0
    %1417 = vmatpush1.msra.mxu0 0.0
    %1418 = vmatprep.subr.mxu0 0.0
    %1419 = vmatpush1.msra.mxu0 0.0
    %1420 = vmatprep.mubr.f32.mxu0 0.0
    %1421 = vmatmul.mubr.f32.gmra.mrb[0].mxu0 %v1355
    %v1422 = vpop.f32.mrb[0].mxu0
    %v1423 = vadd.f32 0.0, %v1422
    %v1424 = vpop.f32.mrb[0].mxu0
    %v1425 = vadd.f32 0.0, %v1424
    %1426 = vdwg.mxu0
    %1427 = vmatprep.subr.mxu0 0.0
    %1428 = vmatpush1.msra.mxu0 %v331
    %1429 = vmatprep.subr.mxu0 0.0
    %1430 = vmatpush1.msra.mxu0 %v334
    %1431 = vmatprep.subr.mxu0 0.0
    %1432 = vmatpush1.msra.mxu0 %v337
    %1433 = vmatprep.subr.mxu0 0.0
    %1434 = vmatpush1.msra.mxu0 %v340
    %1435 = vmatprep.subr.mxu0 0.0
    %1436 = vmatpush1.msra.mxu0 %v343
    %1437 = vmatprep.subr.mxu0 0.0
    %1438 = vmatpush1.msra.mxu0 %v346
    %1439 = vmatprep.subr.mxu0 0.0
    %1440 = vmatpush1.msra.mxu0 %v349
    %1441 = vmatprep.subr.mxu0 0.0
    %1442 = vmatpush1.msra.mxu0 %v352
    %1443 = vmatprep.subr.mxu0 0.0
    %1444 = vmatpush1.msra.mxu0 %v355
    %1445 = vmatprep.subr.mxu0 0.0
    %1446 = vmatpush1.msra.mxu0 %v358
    %1447 = vmatprep.subr.mxu0 0.0
    %1448 = vmatpush1.msra.mxu0 %v361
    %1449 = vmatprep.subr.mxu0 0.0
    %1450 = vmatpush1.msra.mxu0 %v364
    %1451 = vmatprep.subr.mxu0 0.0
    %1452 = vmatpush1.msra.mxu0 %v367
    %1453 = vmatprep.subr.mxu0 0.0
    %1454 = vmatpush1.msra.mxu0 %v370
    %1455 = vmatprep.subr.mxu0 0.0
    %1456 = vmatpush1.msra.mxu0 %v373
    %1457 = vmatprep.subr.mxu0 0.0
    %1458 = vmatpush1.msra.mxu0 %v376
    %1459 = vmatprep.subr.mxu0 0.0
    %1460 = vmatpush1.msra.mxu0 0.0
    %1461 = vmatprep.subr.mxu0 0.0
    %1462 = vmatpush1.msra.mxu0 0.0
    %1463 = vmatprep.subr.mxu0 0.0
    %1464 = vmatpush1.msra.mxu0 0.0
    %1465 = vmatprep.subr.mxu0 0.0
    %1466 = vmatpush1.msra.mxu0 0.0
    %1467 = vmatprep.subr.mxu0 0.0
    %1468 = vmatpush1.msra.mxu0 0.0
    %1469 = vmatprep.subr.mxu0 0.0
    %1470 = vmatpush1.msra.mxu0 0.0
    %1471 = vmatprep.subr.mxu0 0.0
    %1472 = vmatpush1.msra.mxu0 0.0
    %1473 = vmatprep.subr.mxu0 0.0
    %1474 = vmatpush1.msra.mxu0 0.0
    %1475 = vmatprep.subr.mxu0 0.0
    %1476 = vmatpush1.msra.mxu0 0.0
    %1477 = vmatprep.subr.mxu0 0.0
    %1478 = vmatpush1.msra.mxu0 0.0
    %1479 = vmatprep.subr.mxu0 0.0
    %1480 = vmatpush1.msra.mxu0 0.0
    %1481 = vmatprep.subr.mxu0 0.0
    %1482 = vmatpush1.msra.mxu0 0.0
    %1483 = vmatprep.subr.mxu0 0.0
    %1484 = vmatpush1.msra.mxu0 0.0
    %1485 = vmatprep.subr.mxu0 0.0
    %1486 = vmatpush1.msra.mxu0 0.0
    %1487 = vmatprep.subr.mxu0 0.0
    %1488 = vmatpush1.msra.mxu0 0.0
    %1489 = vmatprep.subr.mxu0 0.0
    %1490 = vmatpush1.msra.mxu0 0.0
    %1491 = vmatprep.mubr.f32.mxu0 0.0
    %1492 = vmatmul.mubr.f32.gmra.mrb[0].mxu0 %v1355
    %v1493 = vpop.f32.mrb[0].mxu0
    %v1494 = vadd.f32 0.0, %v1493
    %v1495 = vpop.f32.mrb[0].mxu0
    %1496 = vdwg.mxu0
    %v1497 = vadd.f32 %v214, %v1423
    %v1498 = vxor.u32 %v1497, 2147483648
    %v1499 = vmul.f32 %v1498, 1.442695
    %v1500 = vpow.pop %v1499
    %v1501 = vadd.f32 %v1500, 1.0
    %v1502 = vrcp.pop %v1501
    %v1503 = vmul.f32 1.0, %v1502
    %v1504 = vadd.f32 %v216, %v1425
    %v1505 = vxor.u32 %v1504, 2147483648
    %v1506 = vmul.f32 %v1505, 1.442695
    %v1507 = vpow.pop %v1506
    %v1508 = vadd.f32 %v1507, 1.0
    %v1509 = vrcp.pop %v1508
    %v1510 = vmul.f32 1.0, %v1509
    %v1511 = vadd.f32 %v1494, %v377
    %v1512 = vmul.f32 %v1503, %v1511
    %v1513 = vadd.f32 %v321, %v1512
    %v1514 = vtanh.pop %v1513
    %v1515 = vsub.f32 1.0, %v1510
    %v1516 = vmul.f32 %v1515, %v1514
    %v1517 = vmul.f32 %v1510, %v1355
    %v1518 = vadd.f32 %v1516, %v1517
    %1519 = vmatprep.subr.mxu0 %v330
    %1520 = vmatpush1.msra.mxu0 %v329
    %1521 = vmatprep.subr.mxu0 %v333
    %1522 = vmatpush1.msra.mxu0 %v332
    %1523 = vmatprep.subr.mxu0 %v336
    %1524 = vmatpush1.msra.mxu0 %v335
    %1525 = vmatprep.subr.mxu0 %v339
    %1526 = vmatpush1.msra.mxu0 %v338
    %1527 = vmatprep.subr.mxu0 %v342
    %1528 = vmatpush1.msra.mxu0 %v341
    %1529 = vmatprep.subr.mxu0 %v345
    %1530 = vmatpush1.msra.mxu0 %v344
    %1531 = vmatprep.subr.mxu0 %v348
    %1532 = vmatpush1.msra.mxu0 %v347
    %1533 = vmatprep.subr.mxu0 %v351
    %1534 = vmatpush1.msra.mxu0 %v350
    %1535 = vmatprep.subr.mxu0 %v354
    %1536 = vmatpush1.msra.mxu0 %v353
    %1537 = vmatprep.subr.mxu0 %v357
    %1538 = vmatpush1.msra.mxu0 %v356
    %1539 = vmatprep.subr.mxu0 %v360
    %1540 = vmatpush1.msra.mxu0 %v359
    %1541 = vmatprep.subr.mxu0 %v363
    %1542 = vmatpush1.msra.mxu0 %v362
    %1543 = vmatprep.subr.mxu0 %v366
    %1544 = vmatpush1.msra.mxu0 %v365
    %1545 = vmatprep.subr.mxu0 %v369
    %1546 = vmatpush1.msra.mxu0 %v368
    %1547 = vmatprep.subr.mxu0 %v372
    %1548 = vmatpush1.msra.mxu0 %v371
    %1549 = vmatprep.subr.mxu0 %v375
    %1550 = vmatpush1.msra.mxu0 %v374
    %1551 = vmatprep.subr.mxu0 0.0
    %1552 = vmatpush1.msra.mxu0 0.0
    %1553 = vmatprep.subr.mxu0 0.0
    %1554 = vmatpush1.msra.mxu0 0.0
    %1555 = vmatprep.subr.mxu0 0.0
    %1556 = vmatpush1.msra.mxu0 0.0
    %1557 = vmatprep.subr.mxu0 0.0
    %1558 = vmatpush1.msra.mxu0 0.0
    %1559 = vmatprep.subr.mxu0 0.0
    %1560 = vmatpush1.msra.mxu0 0.0
    %1561 = vmatprep.subr.mxu0 0.0
    %1562 = vmatpush1.msra.mxu0 0.0
    %1563 = vmatprep.subr.mxu0 0.0
    %1564 = vmatpush1.msra.mxu0 0.0
    %1565 = vmatprep.subr.mxu0 0.0
    %1566 = vmatpush1.msra.mxu0 0.0
    %1567 = vmatprep.subr.mxu0 0.0
    %1568 = vmatpush1.msra.mxu0 0.0
    %1569 = vmatprep.subr.mxu0 0.0
    %1570 = vmatpush1.msra.mxu0 0.0
    %1571 = vmatprep.subr.mxu0 0.0
    %1572 = vmatpush1.msra.mxu0 0.0
    %1573 = vmatprep.subr.mxu0 0.0
    %1574 = vmatpush1.msra.mxu0 0.0
    %1575 = vmatprep.subr.mxu0 0.0
    %1576 = vmatpush1.msra.mxu0 0.0
    %1577 = vmatprep.subr.mxu0 0.0
    %1578 = vmatpush1.msra.mxu0 0.0
    %1579 = vmatprep.subr.mxu0 0.0
    %1580 = vmatpush1.msra.mxu0 0.0
    %1581 = vmatprep.subr.mxu0 0.0
    %1582 = vmatpush1.msra.mxu0 0.0
    %1583 = vmatprep.mubr.f32.mxu0 0.0
    %1584 = vmatmul.mubr.f32.gmra.mrb[0].mxu0 %v1518
    %v1585 = vpop.f32.mrb[0].mxu0
    %v1586 = vadd.f32 0.0, %v1585
    %v1587 = vpop.f32.mrb[0].mxu0
    %v1588 = vadd.f32 0.0, %v1587
    %1589 = vdwg.mxu0
    %1590 = vmatprep.subr.mxu0 0.0
    %1591 = vmatpush1.msra.mxu0 %v331
    %1592 = vmatprep.subr.mxu0 0.0
    %1593 = vmatpush1.msra.mxu0 %v334
    %1594 = vmatprep.subr.mxu0 0.0
    %1595 = vmatpush1.msra.mxu0 %v337
    %1596 = vmatprep.subr.mxu0 0.0
    %1597 = vmatpush1.msra.mxu0 %v340
    %1598 = vmatprep.subr.mxu0 0.0
    %1599 = vmatpush1.msra.mxu0 %v343
    %1600 = vmatprep.subr.mxu0 0.0
    %1601 = vmatpush1.msra.mxu0 %v346
    %1602 = vmatprep.subr.mxu0 0.0
    %1603 = vmatpush1.msra.mxu0 %v349
    %1604 = vmatprep.subr.mxu0 0.0
    %1605 = vmatpush1.msra.mxu0 %v352
    %1606 = vmatprep.subr.mxu0 0.0
    %1607 = vmatpush1.msra.mxu0 %v355
    %1608 = vmatprep.subr.mxu0 0.0
    %1609 = vmatpush1.msra.mxu0 %v358
    %1610 = vmatprep.subr.mxu0 0.0
    %1611 = vmatpush1.msra.mxu0 %v361
    %1612 = vmatprep.subr.mxu0 0.0
    %1613 = vmatpush1.msra.mxu0 %v364
    %1614 = vmatprep.subr.mxu0 0.0
    %1615 = vmatpush1.msra.mxu0 %v367
    %1616 = vmatprep.subr.mxu0 0.0
    %1617 = vmatpush1.msra.mxu0 %v370
    %1618 = vmatprep.subr.mxu0 0.0
    %1619 = vmatpush1.msra.mxu0 %v373
    %1620 = vmatprep.subr.mxu0 0.0
    %1621 = vmatpush1.msra.mxu0 %v376
    %1622 = vmatprep.subr.mxu0 0.0
    %1623 = vmatpush1.msra.mxu0 0.0
    %1624 = vmatprep.subr.mxu0 0.0
    %1625 = vmatpush1.msra.mxu0 0.0
    %1626 = vmatprep.subr.mxu0 0.0
    %1627 = vmatpush1.msra.mxu0 0.0
    %1628 = vmatprep.subr.mxu0 0.0
    %1629 = vmatpush1.msra.mxu0 0.0
    %1630 = vmatprep.subr.mxu0 0.0
    %1631 = vmatpush1.msra.mxu0 0.0
    %1632 = vmatprep.subr.mxu0 0.0
    %1633 = vmatpush1.msra.mxu0 0.0
    %1634 = vmatprep.subr.mxu0 0.0
    %1635 = vmatpush1.msra.mxu0 0.0
    %1636 = vmatprep.subr.mxu0 0.0
    %1637 = vmatpush1.msra.mxu0 0.0
    %1638 = vmatprep.subr.mxu0 0.0
    %1639 = vmatpush1.msra.mxu0 0.0
    %1640 = vmatprep.subr.mxu0 0.0
    %1641 = vmatpush1.msra.mxu0 0.0
    %1642 = vmatprep.subr.mxu0 0.0
    %1643 = vmatpush1.msra.mxu0 0.0
    %1644 = vmatprep.subr.mxu0 0.0
    %1645 = vmatpush1.msra.mxu0 0.0
    %1646 = vmatprep.subr.mxu0 0.0
    %1647 = vmatpush1.msra.mxu0 0.0
    %1648 = vmatprep.subr.mxu0 0.0
    %1649 = vmatpush1.msra.mxu0 0.0
    %1650 = vmatprep.subr.mxu0 0.0
    %1651 = vmatpush1.msra.mxu0 0.0
    %1652 = vmatprep.subr.mxu0 0.0
    %1653 = vmatpush1.msra.mxu0 0.0
    %1654 = vmatprep.mubr.f32.mxu0 0.0
    %1655 = vmatmul.mubr.f32.gmra.mrb[0].mxu0 %v1518
    %v1656 = vpop.f32.mrb[0].mxu0
    %v1657 = vadd.f32 0.0, %v1656
    %v1658 = vpop.f32.mrb[0].mxu0
    %1659 = vdwg.mxu0
    %v1660 = vadd.f32 %v220, %v1586
    %v1661 = vxor.u32 %v1660, 2147483648
    %v1662 = vmul.f32 %v1661, 1.442695
    %v1663 = vpow.pop %v1662
    %v1664 = vadd.f32 %v1663, 1.0
    %v1665 = vrcp.pop %v1664
    %v1666 = vmul.f32 1.0, %v1665
    %v1667 = vadd.f32 %v222, %v1588
    %v1668 = vxor.u32 %v1667, 2147483648
    %v1669 = vmul.f32 %v1668, 1.442695
    %v1670 = vpow.pop %v1669
    %v1671 = vadd.f32 %v1670, 1.0
    %v1672 = vrcp.pop %v1671
    %v1673 = vmul.f32 1.0, %v1672
    %v1674 = vadd.f32 %v1657, %v377
    %v1675 = vmul.f32 %v1666, %v1674
    %v1676 = vadd.f32 %v326, %v1675
    %v1677 = vtanh.pop %v1676
    %v1678 = vsub.f32 1.0, %v1673
    %v1679 = vmul.f32 %v1678, %v1677
    %v1680 = vmul.f32 %v1673, %v1518
    %v1681 = vadd.f32 %v1679, %v1680
    %v1682 = vmax.f32 %v1681, 0.0
    %v1683 = vld [vmem:[#allocation5] sm:$0xff]
    %v1684 = vld [vmem:[#allocation5 + $0x8] sm:$0xff]
    %v1685 = vld [vmem:[#allocation5 + $0x10] sm:$0xff]
    %v1686 = vld [vmem:[#allocation5 + $0x18] sm:$0xff]
    %v1687 = vld [vmem:[#allocation5 + $0x20] sm:$0xff]
    %v1688 = vld [vmem:[#allocation5 + $0x28] sm:$0xff]
    %v1689 = vld [vmem:[#allocation5 + $0x30] sm:$0xff]
    %v1690 = vld [vmem:[#allocation5 + $0x38] sm:$0xff]
    %v1691 = vld [vmem:[#allocation5 + $0x40] sm:$0xff]
    %v1692 = vld [vmem:[#allocation5 + $0x48] sm:$0xff]
    %v1693 = vld [vmem:[#allocation5 + $0x50] sm:$0xff]
    %v1694 = vld [vmem:[#allocation5 + $0x58] sm:$0xff]
    %v1695 = vld [vmem:[#allocation5 + $0x60] sm:$0xff]
    %v1696 = vld [vmem:[#allocation5 + $0x68] sm:$0xff]
    %v1697 = vld [vmem:[#allocation5 + $0x70] sm:$0xff]
    %v1698 = vld [vmem:[#allocation5 + $0x78] sm:$0xff]
    %v1699 = vld [vmem:[%s4 + $0x2] ss:$0 sm:$0xff]
    %1700 = vmatprep.subr.mxu0 0.0
    %1701 = vmatpush1.msra.mxu0 %v1683
    %1702 = vmatprep.subr.mxu0 0.0
    %1703 = vmatpush1.msra.mxu0 %v1684
    %1704 = vmatprep.subr.mxu0 0.0
    %1705 = vmatpush1.msra.mxu0 %v1685
    %1706 = vmatprep.subr.mxu0 0.0
    %1707 = vmatpush1.msra.mxu0 %v1686
    %1708 = vmatprep.subr.mxu0 0.0
    %1709 = vmatpush1.msra.mxu0 %v1687
    %1710 = vmatprep.subr.mxu0 0.0
    %1711 = vmatpush1.msra.mxu0 %v1688
    %1712 = vmatprep.subr.mxu0 0.0
    %1713 = vmatpush1.msra.mxu0 %v1689
    %1714 = vmatprep.subr.mxu0 0.0
    %1715 = vmatpush1.msra.mxu0 %v1690
    %1716 = vmatprep.subr.mxu0 0.0
    %1717 = vmatpush1.msra.mxu0 %v1691
    %1718 = vmatprep.subr.mxu0 0.0
    %1719 = vmatpush1.msra.mxu0 %v1692
    %1720 = vmatprep.subr.mxu0 0.0
    %1721 = vmatpush1.msra.mxu0 %v1693
    %1722 = vmatprep.subr.mxu0 0.0
    %1723 = vmatpush1.msra.mxu0 %v1694
    %1724 = vmatprep.subr.mxu0 0.0
    %1725 = vmatpush1.msra.mxu0 %v1695
    %1726 = vmatprep.subr.mxu0 0.0
    %1727 = vmatpush1.msra.mxu0 %v1696
    %1728 = vmatprep.subr.mxu0 0.0
    %1729 = vmatpush1.msra.mxu0 %v1697
    %1730 = vmatprep.subr.mxu0 0.0
    %1731 = vmatpush1.msra.mxu0 %v1698
    %1732 = vmatprep.subr.mxu0 0.0
    %1733 = vmatpush1.msra.mxu0 0.0
    %1734 = vmatprep.subr.mxu0 0.0
    %1735 = vmatpush1.msra.mxu0 0.0
    %1736 = vmatprep.subr.mxu0 0.0
    %1737 = vmatpush1.msra.mxu0 0.0
    %1738 = vmatprep.subr.mxu0 0.0
    %1739 = vmatpush1.msra.mxu0 0.0
    %1740 = vmatprep.subr.mxu0 0.0
    %1741 = vmatpush1.msra.mxu0 0.0
    %1742 = vmatprep.subr.mxu0 0.0
    %1743 = vmatpush1.msra.mxu0 0.0
    %1744 = vmatprep.subr.mxu0 0.0
    %1745 = vmatpush1.msra.mxu0 0.0
    %1746 = vmatprep.subr.mxu0 0.0
    %1747 = vmatpush1.msra.mxu0 0.0
    %1748 = vmatprep.subr.mxu0 0.0
    %1749 = vmatpush1.msra.mxu0 0.0
    %1750 = vmatprep.subr.mxu0 0.0
    %1751 = vmatpush1.msra.mxu0 0.0
    %1752 = vmatprep.subr.mxu0 0.0
    %1753 = vmatpush1.msra.mxu0 0.0
    %1754 = vmatprep.subr.mxu0 0.0
    %1755 = vmatpush1.msra.mxu0 0.0
    %1756 = vmatprep.subr.mxu0 0.0
    %1757 = vmatpush1.msra.mxu0 0.0
    %1758 = vmatprep.subr.mxu0 0.0
    %1759 = vmatpush1.msra.mxu0 0.0
    %1760 = vmatprep.subr.mxu0 0.0
    %1761 = vmatpush1.msra.mxu0 0.0
    %1762 = vmatprep.subr.mxu0 0.0
    %1763 = vmatpush1.msra.mxu0 0.0
    %1764 = vmatprep.mubr.f32.mxu0 0.0
    %1765 = vmatmul.mubr.f32.gmra.mrb[0].mxu0 %v1682
    %v1766 = vpop.f32.mrb[0].mxu0
    %v1767 = vadd.f32 %v1699, %v1766
    %v1768 = vpop.f32.mrb[0].mxu0
    %1769 = vdwg.mxu0
    %v1770 = vmul.f32 %v1767, %v1767
    %1771 = vadd.xlane.f32.xlu0 %v1770
    %v1772 = vpop.xlane.xlu0 %1771
    %v1773 = vmax.f32 %v1772, 1e-24
    %v1774 = vrsqrt.pop %v1773
    %v1775 = vmul.f32 %v1767, %v1774
    %1776 = vst [vmem:[#allocation7] sm:$0xff] %v1775
    // Predicated region
    $region30: #{tpu_custom_call.1} parent=1 // pred_check
      _
    $region31: #{tpu_custom_call.1} parent=1 // pred_check_branch
      %1778 = sbr.rel (0) target = $region33
    $region32: #{tpu_custom_call.1} parent=1 // pred_region
      %s1780 = ssub.s32 128, 128
      %1781 = vsyncadd [#allocation4], %s1780
      %s1783 = sshll.u32 [#allocation7], 4
      %s1784 = int_to_ptr.vmem [resolvable:$true] %s1783
      %1786 = dma.vmem_to_hbm [thread:$0]  %s1784, 128, %s5, [#allocation4]
    $region33: #{tpu_custom_call.1} parent=1 // pred_fallthru
      _
    // Predicated region
    $region34: #{tpu_custom_call.1} parent=1 // pred_check
      _
    $region35: #{tpu_custom_call.1} parent=1 // pred_check_branch
      %1788 = sbr.rel (0) target = $region37
    $region36: #{tpu_custom_call.1} parent=1 // pred_region
      %1789 = dma.done [#allocation4], 128
    $region37: #{tpu_custom_call.1} parent=1 // pred_fallthru
      _
    %1790 = vsyncpa [#allocation3], 1
    %1791 = vsyncpa [#allocation6], 1
    %1792 = vsyncpa [#allocation4], 1

</llo_original>
